<compile_context>
chip_gen: v5e
topology: v5e:2x2
jax: 0.10.0
libtpu: 0.0.40
codegen_flags: <defaults>
</compile_context>

<pallas_src>
import functools

import jax
import jax.numpy as jnp
from jax.experimental import pallas as pl
from jax.experimental.pallas import tpu as pltpu

D_IN, D_H1, D_H2, D_OUT = 1024, 256, 128, 64

# Only split a single-tile batch across two grid steps (for v7x megacore)
# once each half-tile is at least this many rows.
_MIN_TILE_FOR_SPLIT = 256


def _round_up(x, m):
    return (x + m - 1) // m * m


def _cdiv(a, b):
    return -(-a // b)


def mlp_kernel(x_ref, w1_ref, b1_ref, w2_ref, b2_ref, w3_ref, b3_ref, o_ref):
    # x arrives as f32 (single HBM pass); cast to bf16 in-register for the MXU.
    x_bf = x_ref[...].astype(jnp.bfloat16)

    # All matmuls: bf16 operands on the MXU, f32 accumulation.
    # Bias adds and ReLUs stay in f32 on the VPU.
    h1 = jnp.dot(x_bf, w1_ref[...], preferred_element_type=jnp.float32)
    h1 = jnp.maximum(h1 + b1_ref[...], 0.0)

    h2 = jnp.dot(h1.astype(jnp.bfloat16), w2_ref[...],
                 preferred_element_type=jnp.float32)
    h2 = jnp.maximum(h2 + b2_ref[...], 0.0)

    h3 = jnp.dot(h2.astype(jnp.bfloat16), w3_ref[...],
                 preferred_element_type=jnp.float32)
    o_ref[...] = (h3 + b3_ref[...]).astype(o_ref.dtype)


def prepare_params(w1, b1, w2, b2, w3, b3):
    """One-time parameter prep (outside the hot path).

    Weights: (in, out) f32 -> bf16.  Biases: accepted as (N,) (raw PyTorch
    nn.Linear shape) or (1, N); stored as (1, N) f32.
    """
    as_row = lambda b: jnp.asarray(b, jnp.float32).reshape(1, -1)
    return (jnp.asarray(w1, jnp.bfloat16), as_row(b1),
            jnp.asarray(w2, jnp.bfloat16), as_row(b2),
            jnp.asarray(w3, jnp.bfloat16), as_row(b3))


@functools.partial(jax.jit, static_argnames=("block_b",))
def downstream_task_forward(x, w1_bf, b1, w2_bf, b2, w3_bf, b3, *,
                            block_b=2048):
    B = x.shape[0]
    x = x.astype(jnp.float32)  # no-op for f32 inputs; kernel casts per-tile

    # Even tiling: bounds batch padding to <8 rows per tile.
    n_tiles = max(1, _cdiv(B, block_b))
    # v7x megacore: give both TensorCores work once the batch is big enough.
    if n_tiles == 1 and B >= 2 * _MIN_TILE_FOR_SPLIT:
        n_tiles = 2
    bb = _round_up(_cdiv(B, n_tiles), 8)
    B_pad = n_tiles * bb
    if B_pad != B:
        x = jnp.pad(x, ((0, B_pad - B), (0, 0)))

    full = lambda shape: pl.BlockSpec(shape, lambda i: (0, 0))

    out = pl.pallas_call(
        mlp_kernel,
        out_shape=jax.ShapeDtypeStruct((B_pad, D_OUT), jnp.float32),
        grid_spec=pltpu.PrefetchScalarGridSpec(
            num_scalar_prefetch=0,
            grid=(n_tiles,),
            in_specs=[
                pl.BlockSpec((bb, D_IN), lambda i: (i, 0)),  # x tile (f32)
                full((D_IN, D_H1)),   # w1 (bf16), resident
                full((1, D_H1)),      # b1 (f32)
                full((D_H1, D_H2)),   # w2 (bf16)
                full((1, D_H2)),      # b2 (f32)
                full((D_H2, D_OUT)),  # w3 (bf16)
                full((1, D_OUT)),     # b3 (f32)
            ],
            out_specs=pl.BlockSpec((bb, D_OUT), lambda i: (i, 0)),
        ),
        compiler_params=pltpu.CompilerParams(
            # Batch grid shards across TensorCores (v7x megacore).
            dimension_semantics=("parallel",),
            # Explicit budget: ~18-25 MiB at bb=2048 (x double-buffered is the
            # big term); 48 MiB leaves headroom under v7x's 64 MiB physical.
            vmem_limit_bytes=48 * 1024 * 1024,
        ),
    )(x, w1_bf, b1, w2_bf, b2, w3_bf, b3)

    # Only a batch-row slice, and only if we actually padded.
    return out[:B] if B_pad != B else out


def init_params(key):
    """Deterministic PyTorch-style init: U(-1/sqrt(fan_in), 1/sqrt(fan_in)).

    Weights are (in, out) == nn.Linear.weight.T; biases are raw (N,).
    """
    def linear(k, fan_in, fan_out):
        kw, kb = jax.random.split(k)
        bound = 1.0 / jnp.sqrt(fan_in)
        w = jax.random.uniform(kw, (fan_in, fan_out), jnp.float32, -bound, bound)
        b = jax.random.uniform(kb, (fan_out,), jnp.float32, -bound, bound)
        return w, b

    k1, k2, k3 = jax.random.split(key, 3)
    w1, b1 = linear(k1, D_IN, D_H1)
    w2, b2 = linear(k2, D_H1, D_H2)
    w3, b3 = linear(k3, D_H2, D_OUT)
    return w1, b1, w2, b2, w3, b3


if __name__ == "__main__":
    key = jax.random.PRNGKey(0)
    k_params, k_x = jax.random.split(key)

    w1, b1, w2, b2, w3, b3 = init_params(k_params)
    params = prepare_params(w1, b1, w2, b2, w3, b3)  # one-time bf16 cast / reshape

    B = 64  # small demo batch; wrapper handles any B (even tiling, <8-row pad)
    x = jax.random.normal(k_x, (B, D_IN), jnp.float32)

    out = downstream_task_forward(x, *params)
    out = jax.block_until_ready(out)

    # Reference in plain JAX f32 (same semantics as the PyTorch module).
    # Tolerance loosened because the kernel uses bf16 matmul operands with
    # f32 accumulation.
    ref = jnp.maximum(x @ w1 + b1[None, :], 0.0)
    ref = jnp.maximum(ref @ w2 + b2[None, :], 0.0)
    ref = ref @ w3 + b3[None, :]
    assert out.shape == (B, D_OUT)
    assert out.dtype == jnp.float32
    max_err = float(jnp.max(jnp.abs(out - ref)))
    assert max_err < 5e-2, f"max abs error too large: {max_err}"

    print("KERNEL_OK")
</pallas_src>

<mosaic_0001>
module attributes {stable_mosaic.version = 11 : i64} {
  func.func @mlp_kernel(%arg0: i32, %arg1: memref<64x1024xf32, #tpu.memory_space<vmem>>, %arg2: memref<1024x256xbf16, #tpu.memory_space<vmem>>, %arg3: memref<1x256xf32, #tpu.memory_space<vmem>>, %arg4: memref<256x128xbf16, #tpu.memory_space<vmem>>, %arg5: memref<1x128xf32, #tpu.memory_space<vmem>>, %arg6: memref<128x64xbf16, #tpu.memory_space<vmem>>, %arg7: memref<1x64xf32, #tpu.memory_space<vmem>>, %arg8: memref<64x64xf32, #tpu.memory_space<vmem>>) attributes {dimension_semantics = [#tpu.dimension_semantics<parallel>], iteration_bounds = array<i64: 1>, scalar_prefetch = 0 : i64, scratch_operands = 0 : i64, tpu.core_type = #tpu.core_type<tc>, window_params = [{transform_indices = @transform_0, window_bounds = array<i64: 64, 1024>}, {pipeline_mode = #tpu.pipeline_mode<synchronous>, transform_indices = @transform_1, window_bounds = array<i64: 1024, 256>}, {pipeline_mode = #tpu.pipeline_mode<synchronous>, transform_indices = @transform_2, window_bounds = array<i64: 1, 256>}, {pipeline_mode = #tpu.pipeline_mode<synchronous>, transform_indices = @transform_3, window_bounds = array<i64: 256, 128>}, {pipeline_mode = #tpu.pipeline_mode<synchronous>, transform_indices = @transform_4, window_bounds = array<i64: 1, 128>}, {pipeline_mode = #tpu.pipeline_mode<synchronous>, transform_indices = @transform_5, window_bounds = array<i64: 128, 64>}, {pipeline_mode = #tpu.pipeline_mode<synchronous>, transform_indices = @transform_6, window_bounds = array<i64: 1, 64>}, {transform_indices = @transform_7, window_bounds = array<i64: 64, 64>}]} {
    %c0 = arith.constant 0 : index
    %c0_0 = arith.constant 0 : index
    %0 = vector.load %arg1[%c0, %c0_0] : memref<64x1024xf32, #tpu.memory_space<vmem>>, vector<64x1024xf32>
    %1 = arith.truncf %0 : vector<64x1024xf32> to vector<64x1024xbf16>
    %c0_1 = arith.constant 0 : index
    %c0_2 = arith.constant 0 : index
    %2 = vector.load %arg2[%c0_1, %c0_2] : memref<1024x256xbf16, #tpu.memory_space<vmem>>, vector<1024x256xbf16>
    %cst = arith.constant dense<0.000000e+00> : vector<64x256xf32>
    %3 = tpu.matmul %1, %2, %cst {dimension_numbers = #tpu.dot_dimension_numbers<[1], [0], [0], [1], [0, 0, 1, 1], [], []>} : vector<64x1024xbf16>, vector<1024x256xbf16>, vector<64x256xf32> -> vector<64x256xf32>
    %c0_3 = arith.constant 0 : index
    %c0_4 = arith.constant 0 : index
    %4 = vector.load %arg3[%c0_3, %c0_4] : memref<1x256xf32, #tpu.memory_space<vmem>>, vector<1x256xf32>
    %5 = vector.broadcast %4 : vector<1x256xf32> to vector<64x256xf32>
    %6 = arith.addf %3, %5 : vector<64x256xf32>
    %cst_5 = arith.constant 0.000000e+00 : f32
    %7 = vector.broadcast %cst_5 : f32 to vector<64x256xf32>
    %8 = arith.maximumf %6, %7 : vector<64x256xf32>
    %9 = arith.truncf %8 : vector<64x256xf32> to vector<64x256xbf16>
    %c0_6 = arith.constant 0 : index
    %c0_7 = arith.constant 0 : index
    %10 = vector.load %arg4[%c0_6, %c0_7] : memref<256x128xbf16, #tpu.memory_space<vmem>>, vector<256x128xbf16>
    %cst_8 = arith.constant dense<0.000000e+00> : vector<64x128xf32>
    %11 = tpu.matmul %9, %10, %cst_8 {dimension_numbers = #tpu.dot_dimension_numbers<[1], [0], [0], [1], [0, 0, 1, 1], [], []>} : vector<64x256xbf16>, vector<256x128xbf16>, vector<64x128xf32> -> vector<64x128xf32>
    %c0_9 = arith.constant 0 : index
    %c0_10 = arith.constant 0 : index
    %12 = vector.load %arg5[%c0_9, %c0_10] : memref<1x128xf32, #tpu.memory_space<vmem>>, vector<1x128xf32>
    %13 = vector.broadcast %12 : vector<1x128xf32> to vector<64x128xf32>
    %14 = arith.addf %11, %13 : vector<64x128xf32>
    %cst_11 = arith.constant 0.000000e+00 : f32
    %15 = vector.broadcast %cst_11 : f32 to vector<64x128xf32>
    %16 = arith.maximumf %14, %15 : vector<64x128xf32>
    %17 = arith.truncf %16 : vector<64x128xf32> to vector<64x128xbf16>
    %c0_12 = arith.constant 0 : index
    %c0_13 = arith.constant 0 : index
    %18 = vector.load %arg6[%c0_12, %c0_13] : memref<128x64xbf16, #tpu.memory_space<vmem>>, vector<128x64xbf16>
    %cst_14 = arith.constant dense<0.000000e+00> : vector<64x64xf32>
    %19 = tpu.matmul %17, %18, %cst_14 {dimension_numbers = #tpu.dot_dimension_numbers<[1], [0], [0], [1], [0, 0, 1, 1], [], []>} : vector<64x128xbf16>, vector<128x64xbf16>, vector<64x64xf32> -> vector<64x64xf32>
    %c0_15 = arith.constant 0 : index
    %c0_16 = arith.constant 0 : index
    %20 = vector.load %arg7[%c0_15, %c0_16] : memref<1x64xf32, #tpu.memory_space<vmem>>, vector<1x64xf32>
    %21 = vector.broadcast %20 : vector<1x64xf32> to vector<64x64xf32>
    %22 = arith.addf %19, %21 : vector<64x64xf32>
    %c0_17 = arith.constant 0 : index
    %c0_18 = arith.constant 0 : index
    %23 = vector.load %arg8[%c0_17, %c0_18] : memref<64x64xf32, #tpu.memory_space<vmem>>, vector<64x64xf32>
    tpu.vector_store %arg8[%c0_17, %c0_18], %22 {strides = array<i32>} : memref<64x64xf32, #tpu.memory_space<vmem>>, vector<64x64xf32>,
    return
  }
  func.func @transform_0(%arg0: i32) -> (i32, i32) {
    %c0_i32 = arith.constant 0 : i32
    %c0_i32_0 = arith.constant 0 : i32
    return %arg0, %c0_i32 : i32, i32
  }
  func.func @transform_1(%arg0: i32) -> (i32, i32) {
    %c0_i32 = arith.constant 0 : i32
    %c0_i32_0 = arith.constant 0 : i32
    %c0_i32_1 = arith.constant 0 : i32
    return %c0_i32, %c0_i32_0 : i32, i32
  }
  func.func @transform_2(%arg0: i32) -> (i32, i32) {
    %c0_i32 = arith.constant 0 : i32
    %c0_i32_0 = arith.constant 0 : i32
    %c0_i32_1 = arith.constant 0 : i32
    return %c0_i32, %c0_i32_0 : i32, i32
  }
  func.func @transform_3(%arg0: i32) -> (i32, i32) {
    %c0_i32 = arith.constant 0 : i32
    %c0_i32_0 = arith.constant 0 : i32
    %c0_i32_1 = arith.constant 0 : i32
    return %c0_i32, %c0_i32_0 : i32, i32
  }
  func.func @transform_4(%arg0: i32) -> (i32, i32) {
    %c0_i32 = arith.constant 0 : i32
    %c0_i32_0 = arith.constant 0 : i32
    %c0_i32_1 = arith.constant 0 : i32
    return %c0_i32, %c0_i32_0 : i32, i32
  }
  func.func @transform_5(%arg0: i32) -> (i32, i32) {
    %c0_i32 = arith.constant 0 : i32
    %c0_i32_0 = arith.constant 0 : i32
    %c0_i32_1 = arith.constant 0 : i32
    return %c0_i32, %c0_i32_0 : i32, i32
  }
  func.func @transform_6(%arg0: i32) -> (i32, i32) {
    %c0_i32 = arith.constant 0 : i32
    %c0_i32_0 = arith.constant 0 : i32
    %c0_i32_1 = arith.constant 0 : i32
    return %c0_i32, %c0_i32_0 : i32, i32
  }
  func.func @transform_7(%arg0: i32) -> (i32, i32) {
    %c0_i32 = arith.constant 0 : i32
    %c0_i32_0 = arith.constant 0 : i32
    return %arg0, %c0_i32 : i32, i32
  }
}

</mosaic_0001>

<llo_original>
// kernel: downstream_task_forward.1
$region0: #{downstream_task_forward.1}
  #allocation0 [shape = 'u32[]', space=smem, size = 0x4, offset = 0x4, fixed_abs, tag = 'smem constant byte address 0x4 - core index']
  #allocation1 [shape = 'u32[72,128]{1,0:T(1,128)}', space=vmem, size = 0x9000, scoped, tag = 'internal scratch']
  %s0 = inlined_call_operand.hbm [shape: f32[64,1024], index: 0, kind: input, shape index: {}]
  %s1 = inlined_call_operand.hbm [shape: bf16[1024,256], index: 1, kind: input, shape index: {}]
  %s2 = inlined_call_operand.vmem [shape: f32[1,256], index: 2, kind: input, shape index: {}]
  %s3 = inlined_call_operand.hbm [shape: bf16[256,128], index: 3, kind: input, shape index: {}]
  %s4 = inlined_call_operand.vmem [shape: f32[1,128], index: 4, kind: input, shape index: {}]
  %s5 = inlined_call_operand.vmem [shape: bf16[128,64], index: 5, kind: input, shape index: {}]
  %s6 = inlined_call_operand.vmem [shape: f32[1,64], index: 6, kind: input, shape index: {}]
  %s7 = inlined_call_operand.hbm [shape: f32[64,64], index: 7, kind: output, shape index: {}]
  %s8 = sld [smem:[#allocation0]]
  $region50: #{downstream_task_forward.1} parent=0
    _
  %s10 = ssub.s32 1, %s8
  %s11 = scalar_select 0, %s10, %s8
  $region1: #{downstream_task_forward.1} parent=0
    #allocation2 [shape = 'u8[262144]{0}', space=vmem, size = 0x40000, scoped, tag = 'input window, operand 0, single buffered']
    #allocation3 [shape = 's32[1]{0}', space=sflag, size = 0x4, scoped, tag = 'scoped memory for downstream_task_forward.1']
    #allocation4 [shape = 's32[1]{0}', space=sflag, size = 0x4, scoped, tag = 'scoped memory for downstream_task_forward.1']
    #allocation5 [shape = 'u8[524288]{0}', space=vmem, size = 0x80000, scoped, tag = 'input window, operand 1, single buffered']
    #allocation6 [shape = 's32[1]{0}', space=sflag, size = 0x4, scoped, tag = 'scoped memory for downstream_task_forward.1']
    #allocation7 [shape = 'u8[65536]{0}', space=vmem, size = 0x10000, scoped, tag = 'input window, operand 3, single buffered']
    #allocation8 [shape = 'u8[32768]{0}', space=vmem, size = 0x8000, scoped, tag = 'output window, operand 0, single buffered']
    %12 = vsyncpa [#allocation3], 0
    %13 = vsyncpa [#allocation6], 0
    %14 = vsyncpa [#allocation4], 0
    // Predicated region
    $region2: #{downstream_task_forward.1} parent=1 // pred_check
      _
    $region3: #{downstream_task_forward.1} parent=1 // pred_check_branch
      %16 = sbr.rel (0) target = $region5
    $region4: #{downstream_task_forward.1} parent=1 // pred_region
      %18 = vsyncadd [#allocation3], 0
      %s19 = sshll.u32 %s0, 4
      %s20 = int_to_ptr.hbm [resolvable:$true] %s19
      %s21 = sshll.u32 [#allocation2], 4
      %s22 = int_to_ptr.vmem [resolvable:$true] %s21
      %27 = dma.hbm_to_vmem [thread:$0]  %s20, 8192, %s22, [#allocation3], 1024, 1024, 64
    $region5: #{downstream_task_forward.1} parent=1 // pred_fallthru
      _
    // Predicated region
    $region6: #{downstream_task_forward.1} parent=1 // pred_check
      _
    $region7: #{downstream_task_forward.1} parent=1 // pred_check_branch
      %29 = sbr.rel (0) target = $region9
    $region8: #{downstream_task_forward.1} parent=1 // pred_region
      %31 = vsyncadd [#allocation6], 0
      %s32 = sshll.u32 %s1, 4
      %s33 = int_to_ptr.hbm [resolvable:$true] %s32
      %s34 = sshll.u32 [#allocation5], 4
      %s35 = int_to_ptr.vmem [resolvable:$true] %s34
      %40 = dma.hbm_to_vmem [thread:$0]  %s33, 16384, %s35, [#allocation6], 128, 128, 8
    $region9: #{downstream_task_forward.1} parent=1 // pred_fallthru
      _
    // Predicated region
    $region10: #{downstream_task_forward.1} parent=1 // pred_check
      _
    $region11: #{downstream_task_forward.1} parent=1 // pred_check_branch
      %42 = sbr.rel (0) target = $region13
    $region12: #{downstream_task_forward.1} parent=1 // pred_region
      _
    $region13: #{downstream_task_forward.1} parent=1 // pred_fallthru
      _
    // Predicated region
    $region14: #{downstream_task_forward.1} parent=1 // pred_check
      _
    $region15: #{downstream_task_forward.1} parent=1 // pred_check_branch
      %44 = sbr.rel (0) target = $region17
    $region16: #{downstream_task_forward.1} parent=1 // pred_region
      %46 = vsyncadd [#allocation6], 0
      %s47 = sshll.u32 %s3, 4
      %s48 = int_to_ptr.hbm [resolvable:$true] %s47
      %s49 = sshll.u32 [#allocation7], 4
      %s50 = int_to_ptr.vmem [resolvable:$true] %s49
      %55 = dma.hbm_to_vmem [thread:$0]  %s48, 2048, %s50, [#allocation6], 64, 64, 4
    $region17: #{downstream_task_forward.1} parent=1 // pred_fallthru
      _
    // Predicated region
    $region18: #{downstream_task_forward.1} parent=1 // pred_check
      _
    $region19: #{downstream_task_forward.1} parent=1 // pred_check_branch
      %57 = sbr.rel (0) target = $region21
    $region20: #{downstream_task_forward.1} parent=1 // pred_region
      _
    $region21: #{downstream_task_forward.1} parent=1 // pred_fallthru
      _
    // Predicated region
    $region22: #{downstream_task_forward.1} parent=1 // pred_check
      _
    $region23: #{downstream_task_forward.1} parent=1 // pred_check_branch
      %59 = sbr.rel (0) target = $region25
    $region24: #{downstream_task_forward.1} parent=1 // pred_region
      _
    $region25: #{downstream_task_forward.1} parent=1 // pred_fallthru
      _
    // Predicated region
    $region26: #{downstream_task_forward.1} parent=1 // pred_check
      _
    $region27: #{downstream_task_forward.1} parent=1 // pred_check_branch
      %61 = sbr.rel (0) target = $region29
    $region28: #{downstream_task_forward.1} parent=1 // pred_region
      _
    $region29: #{downstream_task_forward.1} parent=1 // pred_fallthru
      _
    // Predicated region
    $region30: #{downstream_task_forward.1} parent=1 // pred_check
      _
    $region31: #{downstream_task_forward.1} parent=1 // pred_check_branch
      %63 = sbr.rel (0) target = $region33
    $region32: #{downstream_task_forward.1} parent=1 // pred_region
      %65 = dma.done [#allocation3], 8192
    $region33: #{downstream_task_forward.1} parent=1 // pred_fallthru
      _
    // Predicated region
    $region34: #{downstream_task_forward.1} parent=1 // pred_check
      _
    $region35: #{downstream_task_forward.1} parent=1 // pred_check_branch
      %67 = sbr.rel (0) target = $region37
    $region36: #{downstream_task_forward.1} parent=1 // pred_region
      %69 = dma.done [#allocation6], 16384
    $region37: #{downstream_task_forward.1} parent=1 // pred_fallthru
      _
    // Predicated region
    $region38: #{downstream_task_forward.1} parent=1 // pred_check
      _
    $region39: #{downstream_task_forward.1} parent=1 // pred_check_branch
      %71 = sbr.rel (0) target = $region41
    $region40: #{downstream_task_forward.1} parent=1 // pred_region
      %73 = dma.done [#allocation6], 2048
    $region41: #{downstream_task_forward.1} parent=1 // pred_fallthru
      _
    %v74 = vld [vmem:[#allocation2] sm:$0xff]
    %v75 = vld [vmem:[#allocation2 + $0x8] sm:$0xff]
    %v76 = vld [vmem:[#allocation2 + $0x10] sm:$0xff]
    %v77 = vld [vmem:[#allocation2 + $0x18] sm:$0xff]
    %v78 = vld [vmem:[#allocation2 + $0x20] sm:$0xff]
    %v79 = vld [vmem:[#allocation2 + $0x28] sm:$0xff]
    %v80 = vld [vmem:[#allocation2 + $0x30] sm:$0xff]
    %v81 = vld [vmem:[#allocation2 + $0x38] sm:$0xff]
    %v82 = vld [vmem:[#allocation2 + $0x40] sm:$0xff]
    %v83 = vld [vmem:[#allocation2 + $0x48] sm:$0xff]
    %v84 = vld [vmem:[#allocation2 + $0x50] sm:$0xff]
    %v85 = vld [vmem:[#allocation2 + $0x58] sm:$0xff]
    %v86 = vld [vmem:[#allocation2 + $0x60] sm:$0xff]
    %v87 = vld [vmem:[#allocation2 + $0x68] sm:$0xff]
    %v88 = vld [vmem:[#allocation2 + $0x70] sm:$0xff]
    %v89 = vld [vmem:[#allocation2 + $0x78] sm:$0xff]
    %v90 = vld [vmem:[#allocation2 + $0x80] sm:$0xff]
    %v91 = vld [vmem:[#allocation2 + $0x88] sm:$0xff]
    %v92 = vld [vmem:[#allocation2 + $0x90] sm:$0xff]
    %v93 = vld [vmem:[#allocation2 + $0x98] sm:$0xff]
    %v94 = vld [vmem:[#allocation2 + $0xa0] sm:$0xff]
    %v95 = vld [vmem:[#allocation2 + $0xa8] sm:$0xff]
    %v96 = vld [vmem:[#allocation2 + $0xb0] sm:$0xff]
    %v97 = vld [vmem:[#allocation2 + $0xb8] sm:$0xff]
    %v98 = vld [vmem:[#allocation2 + $0xc0] sm:$0xff]
    %v99 = vld [vmem:[#allocation2 + $0xc8] sm:$0xff]
    %v100 = vld [vmem:[#allocation2 + $0xd0] sm:$0xff]
    %v101 = vld [vmem:[#allocation2 + $0xd8] sm:$0xff]
    %v102 = vld [vmem:[#allocation2 + $0xe0] sm:$0xff]
    %v103 = vld [vmem:[#allocation2 + $0xe8] sm:$0xff]
    %v104 = vld [vmem:[#allocation2 + $0xf0] sm:$0xff]
    %v105 = vld [vmem:[#allocation2 + $0xf8] sm:$0xff]
    %v106 = vld [vmem:[#allocation2 + $0x100] sm:$0xff]
    %v107 = vld [vmem:[#allocation2 + $0x108] sm:$0xff]
    %v108 = vld [vmem:[#allocation2 + $0x110] sm:$0xff]
    %v109 = vld [vmem:[#allocation2 + $0x118] sm:$0xff]
    %v110 = vld [vmem:[#allocation2 + $0x120] sm:$0xff]
    %v111 = vld [vmem:[#allocation2 + $0x128] sm:$0xff]
    %v112 = vld [vmem:[#allocation2 + $0x130] sm:$0xff]
    %v113 = vld [vmem:[#allocation2 + $0x138] sm:$0xff]
    %v114 = vld [vmem:[#allocation2 + $0x140] sm:$0xff]
    %v115 = vld [vmem:[#allocation2 + $0x148] sm:$0xff]
    %v116 = vld [vmem:[#allocation2 + $0x150] sm:$0xff]
    %v117 = vld [vmem:[#allocation2 + $0x158] sm:$0xff]
    %v118 = vld [vmem:[#allocation2 + $0x160] sm:$0xff]
    %v119 = vld [vmem:[#allocation2 + $0x168] sm:$0xff]
    %v120 = vld [vmem:[#allocation2 + $0x170] sm:$0xff]
    %v121 = vld [vmem:[#allocation2 + $0x178] sm:$0xff]
    %v122 = vld [vmem:[#allocation2 + $0x180] sm:$0xff]
    %v123 = vld [vmem:[#allocation2 + $0x188] sm:$0xff]
    %v124 = vld [vmem:[#allocation2 + $0x190] sm:$0xff]
    %v125 = vld [vmem:[#allocation2 + $0x198] sm:$0xff]
    %v126 = vld [vmem:[#allocation2 + $0x1a0] sm:$0xff]
    %v127 = vld [vmem:[#allocation2 + $0x1a8] sm:$0xff]
    %v128 = vld [vmem:[#allocation2 + $0x1b0] sm:$0xff]
    %v129 = vld [vmem:[#allocation2 + $0x1b8] sm:$0xff]
    %v130 = vld [vmem:[#allocation2 + $0x1c0] sm:$0xff]
    %v131 = vld [vmem:[#allocation2 + $0x1c8] sm:$0xff]
    %v132 = vld [vmem:[#allocation2 + $0x1d0] sm:$0xff]
    %v133 = vld [vmem:[#allocation2 + $0x1d8] sm:$0xff]
    %v134 = vld [vmem:[#allocation2 + $0x1e0] sm:$0xff]
    %v135 = vld [vmem:[#allocation2 + $0x1e8] sm:$0xff]
    %v136 = vld [vmem:[#allocation2 + $0x1f0] sm:$0xff]
    %v137 = vld [vmem:[#allocation2 + $0x1f8] sm:$0xff]
    %v138 = vpack.c.bf16 %v82, %v74
    %v139 = vpack.c.bf16 %v83, %v75
    %v140 = vpack.c.bf16 %v84, %v76
    %v141 = vpack.c.bf16 %v85, %v77
    %v142 = vpack.c.bf16 %v86, %v78
    %v143 = vpack.c.bf16 %v87, %v79
    %v144 = vpack.c.bf16 %v88, %v80
    %v145 = vpack.c.bf16 %v89, %v81
    %v146 = vpack.c.bf16 %v98, %v90
    %v147 = vpack.c.bf16 %v99, %v91
    %v148 = vpack.c.bf16 %v100, %v92
    %v149 = vpack.c.bf16 %v101, %v93
    %v150 = vpack.c.bf16 %v102, %v94
    %v151 = vpack.c.bf16 %v103, %v95
    %v152 = vpack.c.bf16 %v104, %v96
    %v153 = vpack.c.bf16 %v105, %v97
    %v154 = vpack.c.bf16 %v114, %v106
    %v155 = vpack.c.bf16 %v115, %v107
    %v156 = vpack.c.bf16 %v116, %v108
    %v157 = vpack.c.bf16 %v117, %v109
    %v158 = vpack.c.bf16 %v118, %v110
    %v159 = vpack.c.bf16 %v119, %v111
    %v160 = vpack.c.bf16 %v120, %v112
    %v161 = vpack.c.bf16 %v121, %v113
    %v162 = vpack.c.bf16 %v130, %v122
    %v163 = vpack.c.bf16 %v131, %v123
    %v164 = vpack.c.bf16 %v132, %v124
    %v165 = vpack.c.bf16 %v133, %v125
    %v166 = vpack.c.bf16 %v134, %v126
    %v167 = vpack.c.bf16 %v135, %v127
    %v168 = vpack.c.bf16 %v136, %v128
    %v169 = vpack.c.bf16 %v137, %v129
    %v170 = vld [vmem:[#allocation5] sm:$0xff]
    %v171 = vld [vmem:[#allocation5 + $0x8] sm:$0xff]
    %v172 = vld [vmem:[#allocation5 + $0x10] sm:$0xff]
    %v173 = vld [vmem:[#allocation5 + $0x18] sm:$0xff]
    %v174 = vld [vmem:[#allocation5 + $0x20] sm:$0xff]
    %v175 = vld [vmem:[#allocation5 + $0x28] sm:$0xff]
    %v176 = vld [vmem:[#allocation5 + $0x30] sm:$0xff]
    %v177 = vld [vmem:[#allocation5 + $0x38] sm:$0xff]
    %v178 = vld [vmem:[#allocation5 + $0x40] sm:$0xff]
    %v179 = vld [vmem:[#allocation5 + $0x48] sm:$0xff]
    %v180 = vld [vmem:[#allocation5 + $0x50] sm:$0xff]
    %v181 = vld [vmem:[#allocation5 + $0x58] sm:$0xff]
    %v182 = vld [vmem:[#allocation5 + $0x60] sm:$0xff]
    %v183 = vld [vmem:[#allocation5 + $0x68] sm:$0xff]
    %v184 = vld [vmem:[#allocation5 + $0x70] sm:$0xff]
    %v185 = vld [vmem:[#allocation5 + $0x78] sm:$0xff]
    %v186 = vld [vmem:[#allocation5 + $0x80] sm:$0xff]
    %v187 = vld [vmem:[#allocation5 + $0x88] sm:$0xff]
    %v188 = vld [vmem:[#allocation5 + $0x90] sm:$0xff]
    %v189 = vld [vmem:[#allocation5 + $0x98] sm:$0xff]
    %v190 = vld [vmem:[#allocation5 + $0xa0] sm:$0xff]
    %v191 = vld [vmem:[#allocation5 + $0xa8] sm:$0xff]
    %v192 = vld [vmem:[#allocation5 + $0xb0] sm:$0xff]
    %v193 = vld [vmem:[#allocation5 + $0xb8] sm:$0xff]
    %v194 = vld [vmem:[#allocation5 + $0xc0] sm:$0xff]
    %v195 = vld [vmem:[#allocation5 + $0xc8] sm:$0xff]
    %v196 = vld [vmem:[#allocation5 + $0xd0] sm:$0xff]
    %v197 = vld [vmem:[#allocation5 + $0xd8] sm:$0xff]
    %v198 = vld [vmem:[#allocation5 + $0xe0] sm:$0xff]
    %v199 = vld [vmem:[#allocation5 + $0xe8] sm:$0xff]
    %v200 = vld [vmem:[#allocation5 + $0xf0] sm:$0xff]
    %v201 = vld [vmem:[#allocation5 + $0xf8] sm:$0xff]
    %v202 = vld [vmem:[#allocation5 + $0x100] sm:$0xff]
    %v203 = vld [vmem:[#allocation5 + $0x108] sm:$0xff]
    %v204 = vld [vmem:[#allocation5 + $0x110] sm:$0xff]
    %v205 = vld [vmem:[#allocation5 + $0x118] sm:$0xff]
    %v206 = vld [vmem:[#allocation5 + $0x120] sm:$0xff]
    %v207 = vld [vmem:[#allocation5 + $0x128] sm:$0xff]
    %v208 = vld [vmem:[#allocation5 + $0x130] sm:$0xff]
    %v209 = vld [vmem:[#allocation5 + $0x138] sm:$0xff]
    %v210 = vld [vmem:[#allocation5 + $0x140] sm:$0xff]
    %v211 = vld [vmem:[#allocation5 + $0x148] sm:$0xff]
    %v212 = vld [vmem:[#allocation5 + $0x150] sm:$0xff]
    %v213 = vld [vmem:[#allocation5 + $0x158] sm:$0xff]
    %v214 = vld [vmem:[#allocation5 + $0x160] sm:$0xff]
    %v215 = vld [vmem:[#allocation5 + $0x168] sm:$0xff]
    %v216 = vld [vmem:[#allocation5 + $0x170] sm:$0xff]
    %v217 = vld [vmem:[#allocation5 + $0x178] sm:$0xff]
    %v218 = vld [vmem:[#allocation5 + $0x180] sm:$0xff]
    %v219 = vld [vmem:[#allocation5 + $0x188] sm:$0xff]
    %v220 = vld [vmem:[#allocation5 + $0x190] sm:$0xff]
    %v221 = vld [vmem:[#allocation5 + $0x198] sm:$0xff]
    %v222 = vld [vmem:[#allocation5 + $0x1a0] sm:$0xff]
    %v223 = vld [vmem:[#allocation5 + $0x1a8] sm:$0xff]
    %v224 = vld [vmem:[#allocation5 + $0x1b0] sm:$0xff]
    %v225 = vld [vmem:[#allocation5 + $0x1b8] sm:$0xff]
    %v226 = vld [vmem:[#allocation5 + $0x1c0] sm:$0xff]
    %v227 = vld [vmem:[#allocation5 + $0x1c8] sm:$0xff]
    %v228 = vld [vmem:[#allocation5 + $0x1d0] sm:$0xff]
    %v229 = vld [vmem:[#allocation5 + $0x1d8] sm:$0xff]
    %v230 = vld [vmem:[#allocation5 + $0x1e0] sm:$0xff]
    %v231 = vld [vmem:[#allocation5 + $0x1e8] sm:$0xff]
    %v232 = vld [vmem:[#allocation5 + $0x1f0] sm:$0xff]
    %v233 = vld [vmem:[#allocation5 + $0x1f8] sm:$0xff]
    %v234 = vld [vmem:[#allocation5 + $0x200] sm:$0xff]
    %v235 = vld [vmem:[#allocation5 + $0x208] sm:$0xff]
    %v236 = vld [vmem:[#allocation5 + $0x210] sm:$0xff]
    %v237 = vld [vmem:[#allocation5 + $0x218] sm:$0xff]
    %v238 = vld [vmem:[#allocation5 + $0x220] sm:$0xff]
    %v239 = vld [vmem:[#allocation5 + $0x228] sm:$0xff]
    %v240 = vld [vmem:[#allocation5 + $0x230] sm:$0xff]
    %v241 = vld [vmem:[#allocation5 + $0x238] sm:$0xff]
    %v242 = vld [vmem:[#allocation5 + $0x240] sm:$0xff]
    %v243 = vld [vmem:[#allocation5 + $0x248] sm:$0xff]
    %v244 = vld [vmem:[#allocation5 + $0x250] sm:$0xff]
    %v245 = vld [vmem:[#allocation5 + $0x258] sm:$0xff]
    %v246 = vld [vmem:[#allocation5 + $0x260] sm:$0xff]
    %v247 = vld [vmem:[#allocation5 + $0x268] sm:$0xff]
    %v248 = vld [vmem:[#allocation5 + $0x270] sm:$0xff]
    %v249 = vld [vmem:[#allocation5 + $0x278] sm:$0xff]
    %v250 = vld [vmem:[#allocation5 + $0x280] sm:$0xff]
    %v251 = vld [vmem:[#allocation5 + $0x288] sm:$0xff]
    %v252 = vld [vmem:[#allocation5 + $0x290] sm:$0xff]
    %v253 = vld [vmem:[#allocation5 + $0x298] sm:$0xff]
    %v254 = vld [vmem:[#allocation5 + $0x2a0] sm:$0xff]
    %v255 = vld [vmem:[#allocation5 + $0x2a8] sm:$0xff]
    %v256 = vld [vmem:[#allocation5 + $0x2b0] sm:$0xff]
    %v257 = vld [vmem:[#allocation5 + $0x2b8] sm:$0xff]
    %v258 = vld [vmem:[#allocation5 + $0x2c0] sm:$0xff]
    %v259 = vld [vmem:[#allocation5 + $0x2c8] sm:$0xff]
    %v260 = vld [vmem:[#allocation5 + $0x2d0] sm:$0xff]
    %v261 = vld [vmem:[#allocation5 + $0x2d8] sm:$0xff]
    %v262 = vld [vmem:[#allocation5 + $0x2e0] sm:$0xff]
    %v263 = vld [vmem:[#allocation5 + $0x2e8] sm:$0xff]
    %v264 = vld [vmem:[#allocation5 + $0x2f0] sm:$0xff]
    %v265 = vld [vmem:[#allocation5 + $0x2f8] sm:$0xff]
    %v266 = vld [vmem:[#allocation5 + $0x300] sm:$0xff]
    %v267 = vld [vmem:[#allocation5 + $0x308] sm:$0xff]
    %v268 = vld [vmem:[#allocation5 + $0x310] sm:$0xff]
    %v269 = vld [vmem:[#allocation5 + $0x318] sm:$0xff]
    %v270 = vld [vmem:[#allocation5 + $0x320] sm:$0xff]
    %v271 = vld [vmem:[#allocation5 + $0x328] sm:$0xff]
    %v272 = vld [vmem:[#allocation5 + $0x330] sm:$0xff]
    %v273 = vld [vmem:[#allocation5 + $0x338] sm:$0xff]
    %v274 = vld [vmem:[#allocation5 + $0x340] sm:$0xff]
    %v275 = vld [vmem:[#allocation5 + $0x348] sm:$0xff]
    %v276 = vld [vmem:[#allocation5 + $0x350] sm:$0xff]
    %v277 = vld [vmem:[#allocation5 + $0x358] sm:$0xff]
    %v278 = vld [vmem:[#allocation5 + $0x360] sm:$0xff]
    %v279 = vld [vmem:[#allocation5 + $0x368] sm:$0xff]
    %v280 = vld [vmem:[#allocation5 + $0x370] sm:$0xff]
    %v281 = vld [vmem:[#allocation5 + $0x378] sm:$0xff]
    %v282 = vld [vmem:[#allocation5 + $0x380] sm:$0xff]
    %v283 = vld [vmem:[#allocation5 + $0x388] sm:$0xff]
    %v284 = vld [vmem:[#allocation5 + $0x390] sm:$0xff]
    %v285 = vld [vmem:[#allocation5 + $0x398] sm:$0xff]
    %v286 = vld [vmem:[#allocation5 + $0x3a0] sm:$0xff]
    %v287 = vld [vmem:[#allocation5 + $0x3a8] sm:$0xff]
    %v288 = vld [vmem:[#allocation5 + $0x3b0] sm:$0xff]
    %v289 = vld [vmem:[#allocation5 + $0x3b8] sm:$0xff]
    %v290 = vld [vmem:[#allocation5 + $0x3c0] sm:$0xff]
    %v291 = vld [vmem:[#allocation5 + $0x3c8] sm:$0xff]
    %v292 = vld [vmem:[#allocation5 + $0x3d0] sm:$0xff]
    %v293 = vld [vmem:[#allocation5 + $0x3d8] sm:$0xff]
    %v294 = vld [vmem:[#allocation5 + $0x3e0] sm:$0xff]
    %v295 = vld [vmem:[#allocation5 + $0x3e8] sm:$0xff]
    %v296 = vld [vmem:[#allocation5 + $0x3f0] sm:$0xff]
    %v297 = vld [vmem:[#allocation5 + $0x3f8] sm:$0xff]
    %v298 = vld [vmem:[%s2] sm:$0x3]
    %v300 = vperm.slane %v298, 0
    %v301 = vperm.slane %v298, 1
    %v432 = vunpack.c.l.b16 %v170
    %v433 = vunpack.c.h.b16 %v170
    %v434 = vunpack.c.l.b16 %v171
    %v435 = vunpack.c.h.b16 %v171
    %v436 = vunpack.c.l.b16 %v172
    %v437 = vunpack.c.h.b16 %v172
    %v438 = vunpack.c.l.b16 %v173
    %v439 = vunpack.c.h.b16 %v173
    %v440 = vunpack.c.l.b16 %v174
    %v441 = vunpack.c.h.b16 %v174
    %v442 = vunpack.c.l.b16 %v175
    %v443 = vunpack.c.h.b16 %v175
    %v444 = vunpack.c.l.b16 %v176
    %v445 = vunpack.c.h.b16 %v176
    %v446 = vunpack.c.l.b16 %v177
    %v447 = vunpack.c.h.b16 %v177
    %v448 = vunpack.c.l.b16 %v178
    %v449 = vunpack.c.h.b16 %v178
    %v450 = vunpack.c.l.b16 %v179
    %v451 = vunpack.c.h.b16 %v179
    %v452 = vunpack.c.l.b16 %v180
    %v453 = vunpack.c.h.b16 %v180
    %v454 = vunpack.c.l.b16 %v181
    %v455 = vunpack.c.h.b16 %v181
    %v456 = vunpack.c.l.b16 %v182
    %v457 = vunpack.c.h.b16 %v182
    %v458 = vunpack.c.l.b16 %v183
    %v459 = vunpack.c.h.b16 %v183
    %v460 = vunpack.c.l.b16 %v184
    %v461 = vunpack.c.h.b16 %v184
    %v462 = vunpack.c.l.b16 %v185
    %v463 = vunpack.c.h.b16 %v185
    %v464 = vunpack.c.l.b16 %v186
    %v465 = vunpack.c.h.b16 %v186
    %v466 = vunpack.c.l.b16 %v187
    %v467 = vunpack.c.h.b16 %v187
    %v468 = vunpack.c.l.b16 %v188
    %v469 = vunpack.c.h.b16 %v188
    %v470 = vunpack.c.l.b16 %v189
    %v471 = vunpack.c.h.b16 %v189
    %v472 = vunpack.c.l.b16 %v190
    %v473 = vunpack.c.h.b16 %v190
    %v474 = vunpack.c.l.b16 %v191
    %v475 = vunpack.c.h.b16 %v191
    %v476 = vunpack.c.l.b16 %v192
    %v477 = vunpack.c.h.b16 %v192
    %v478 = vunpack.c.l.b16 %v193
    %v479 = vunpack.c.h.b16 %v193
    %v480 = vunpack.c.l.b16 %v194
    %v481 = vunpack.c.h.b16 %v194
    %v482 = vunpack.c.l.b16 %v195
    %v483 = vunpack.c.h.b16 %v195
    %v484 = vunpack.c.l.b16 %v196
    %v485 = vunpack.c.h.b16 %v196
    %v486 = vunpack.c.l.b16 %v197
    %v487 = vunpack.c.h.b16 %v197
    %v488 = vunpack.c.l.b16 %v198
    %v489 = vunpack.c.h.b16 %v198
    %v490 = vunpack.c.l.b16 %v199
    %v491 = vunpack.c.h.b16 %v199
    %v492 = vunpack.c.l.b16 %v200
    %v493 = vunpack.c.h.b16 %v200
    %v494 = vunpack.c.l.b16 %v201
    %v495 = vunpack.c.h.b16 %v201
    %v496 = vunpack.c.l.b16 %v202
    %v497 = vunpack.c.h.b16 %v202
    %v498 = vunpack.c.l.b16 %v203
    %v499 = vunpack.c.h.b16 %v203
    %v500 = vunpack.c.l.b16 %v204
    %v501 = vunpack.c.h.b16 %v204
    %v502 = vunpack.c.l.b16 %v205
    %v503 = vunpack.c.h.b16 %v205
    %v504 = vunpack.c.l.b16 %v206
    %v505 = vunpack.c.h.b16 %v206
    %v506 = vunpack.c.l.b16 %v207
    %v507 = vunpack.c.h.b16 %v207
    %v508 = vunpack.c.l.b16 %v208
    %v509 = vunpack.c.h.b16 %v208
    %v510 = vunpack.c.l.b16 %v209
    %v511 = vunpack.c.h.b16 %v209
    %v512 = vunpack.c.l.b16 %v210
    %v513 = vunpack.c.h.b16 %v210
    %v514 = vunpack.c.l.b16 %v211
    %v515 = vunpack.c.h.b16 %v211
    %v516 = vunpack.c.l.b16 %v212
    %v517 = vunpack.c.h.b16 %v212
    %v518 = vunpack.c.l.b16 %v213
    %v519 = vunpack.c.h.b16 %v213
    %v520 = vunpack.c.l.b16 %v214
    %v521 = vunpack.c.h.b16 %v214
    %v522 = vunpack.c.l.b16 %v215
    %v523 = vunpack.c.h.b16 %v215
    %v524 = vunpack.c.l.b16 %v216
    %v525 = vunpack.c.h.b16 %v216
    %v526 = vunpack.c.l.b16 %v217
    %v527 = vunpack.c.h.b16 %v217
    %v528 = vunpack.c.l.b16 %v218
    %v529 = vunpack.c.h.b16 %v218
    %v530 = vunpack.c.l.b16 %v219
    %v531 = vunpack.c.h.b16 %v219
    %v532 = vunpack.c.l.b16 %v220
    %v533 = vunpack.c.h.b16 %v220
    %v534 = vunpack.c.l.b16 %v221
    %v535 = vunpack.c.h.b16 %v221
    %v536 = vunpack.c.l.b16 %v222
    %v537 = vunpack.c.h.b16 %v222
    %v538 = vunpack.c.l.b16 %v223
    %v539 = vunpack.c.h.b16 %v223
    %v540 = vunpack.c.l.b16 %v224
    %v541 = vunpack.c.h.b16 %v224
    %v542 = vunpack.c.l.b16 %v225
    %v543 = vunpack.c.h.b16 %v225
    %v544 = vunpack.c.l.b16 %v226
    %v545 = vunpack.c.h.b16 %v226
    %v546 = vunpack.c.l.b16 %v227
    %v547 = vunpack.c.h.b16 %v227
    %v548 = vunpack.c.l.b16 %v228
    %v549 = vunpack.c.h.b16 %v228
    %v550 = vunpack.c.l.b16 %v229
    %v551 = vunpack.c.h.b16 %v229
    %v552 = vunpack.c.l.b16 %v230
    %v553 = vunpack.c.h.b16 %v230
    %v554 = vunpack.c.l.b16 %v231
    %v555 = vunpack.c.h.b16 %v231
    %v556 = vunpack.c.l.b16 %v232
    %v557 = vunpack.c.h.b16 %v232
    %v558 = vunpack.c.l.b16 %v233
    %v559 = vunpack.c.h.b16 %v233
    %v560 = vunpack.c.l.b16 %v234
    %v561 = vunpack.c.h.b16 %v234
    %v562 = vunpack.c.l.b16 %v235
    %v563 = vunpack.c.h.b16 %v235
    %v564 = vunpack.c.l.b16 %v236
    %v565 = vunpack.c.h.b16 %v236
    %v566 = vunpack.c.l.b16 %v237
    %v567 = vunpack.c.h.b16 %v237
    %v568 = vunpack.c.l.b16 %v238
    %v569 = vunpack.c.h.b16 %v238
    %v570 = vunpack.c.l.b16 %v239
    %v571 = vunpack.c.h.b16 %v239
    %v572 = vunpack.c.l.b16 %v240
    %v573 = vunpack.c.h.b16 %v240
    %v574 = vunpack.c.l.b16 %v241
    %v575 = vunpack.c.h.b16 %v241
    %v576 = vunpack.c.l.b16 %v242
    %v577 = vunpack.c.h.b16 %v242
    %v578 = vunpack.c.l.b16 %v243
    %v579 = vunpack.c.h.b16 %v243
    %v580 = vunpack.c.l.b16 %v244
    %v581 = vunpack.c.h.b16 %v244
    %v582 = vunpack.c.l.b16 %v245
    %v583 = vunpack.c.h.b16 %v245
    %v584 = vunpack.c.l.b16 %v246
    %v585 = vunpack.c.h.b16 %v246
    %v586 = vunpack.c.l.b16 %v247
    %v587 = vunpack.c.h.b16 %v247
    %v588 = vunpack.c.l.b16 %v248
    %v589 = vunpack.c.h.b16 %v248
    %v590 = vunpack.c.l.b16 %v249
    %v591 = vunpack.c.h.b16 %v249
    %v592 = vunpack.c.l.b16 %v250
    %v593 = vunpack.c.h.b16 %v250
    %v594 = vunpack.c.l.b16 %v251
    %v595 = vunpack.c.h.b16 %v251
    %v596 = vunpack.c.l.b16 %v252
    %v597 = vunpack.c.h.b16 %v252
    %v598 = vunpack.c.l.b16 %v253
    %v599 = vunpack.c.h.b16 %v253
    %v600 = vunpack.c.l.b16 %v254
    %v601 = vunpack.c.h.b16 %v254
    %v602 = vunpack.c.l.b16 %v255
    %v603 = vunpack.c.h.b16 %v255
    %v604 = vunpack.c.l.b16 %v256
    %v605 = vunpack.c.h.b16 %v256
    %v606 = vunpack.c.l.b16 %v257
    %v607 = vunpack.c.h.b16 %v257
    %v608 = vunpack.c.l.b16 %v258
    %v609 = vunpack.c.h.b16 %v258
    %v610 = vunpack.c.l.b16 %v259
    %v611 = vunpack.c.h.b16 %v259
    %v612 = vunpack.c.l.b16 %v260
    %v613 = vunpack.c.h.b16 %v260
    %v614 = vunpack.c.l.b16 %v261
    %v615 = vunpack.c.h.b16 %v261
    %v616 = vunpack.c.l.b16 %v262
    %v617 = vunpack.c.h.b16 %v262
    %v618 = vunpack.c.l.b16 %v263
    %v619 = vunpack.c.h.b16 %v263
    %v620 = vunpack.c.l.b16 %v264
    %v621 = vunpack.c.h.b16 %v264
    %v622 = vunpack.c.l.b16 %v265
    %v623 = vunpack.c.h.b16 %v265
    %v624 = vunpack.c.l.b16 %v266
    %v625 = vunpack.c.h.b16 %v266
    %v626 = vunpack.c.l.b16 %v267
    %v627 = vunpack.c.h.b16 %v267
    %v628 = vunpack.c.l.b16 %v268
    %v629 = vunpack.c.h.b16 %v268
    %v630 = vunpack.c.l.b16 %v269
    %v631 = vunpack.c.h.b16 %v269
    %v632 = vunpack.c.l.b16 %v270
    %v633 = vunpack.c.h.b16 %v270
    %v634 = vunpack.c.l.b16 %v271
    %v635 = vunpack.c.h.b16 %v271
    %v636 = vunpack.c.l.b16 %v272
    %v637 = vunpack.c.h.b16 %v272
    %v638 = vunpack.c.l.b16 %v273
    %v639 = vunpack.c.h.b16 %v273
    %v640 = vunpack.c.l.b16 %v274
    %v641 = vunpack.c.h.b16 %v274
    %v642 = vunpack.c.l.b16 %v275
    %v643 = vunpack.c.h.b16 %v275
    %v644 = vunpack.c.l.b16 %v276
    %v645 = vunpack.c.h.b16 %v276
    %v646 = vunpack.c.l.b16 %v277
    %v647 = vunpack.c.h.b16 %v277
    %v648 = vunpack.c.l.b16 %v278
    %v649 = vunpack.c.h.b16 %v278
    %v650 = vunpack.c.l.b16 %v279
    %v651 = vunpack.c.h.b16 %v279
    %v652 = vunpack.c.l.b16 %v280
    %v653 = vunpack.c.h.b16 %v280
    %v654 = vunpack.c.l.b16 %v281
    %v655 = vunpack.c.h.b16 %v281
    %v656 = vunpack.c.l.b16 %v282
    %v657 = vunpack.c.h.b16 %v282
    %v658 = vunpack.c.l.b16 %v283
    %v659 = vunpack.c.h.b16 %v283
    %v660 = vunpack.c.l.b16 %v284
    %v661 = vunpack.c.h.b16 %v284
    %v662 = vunpack.c.l.b16 %v285
    %v663 = vunpack.c.h.b16 %v285
    %v664 = vunpack.c.l.b16 %v286
    %v665 = vunpack.c.h.b16 %v286
    %v666 = vunpack.c.l.b16 %v287
    %v667 = vunpack.c.h.b16 %v287
    %v668 = vunpack.c.l.b16 %v288
    %v669 = vunpack.c.h.b16 %v288
    %v670 = vunpack.c.l.b16 %v289
    %v671 = vunpack.c.h.b16 %v289
    %v672 = vunpack.c.l.b16 %v290
    %v673 = vunpack.c.h.b16 %v290
    %v674 = vunpack.c.l.b16 %v291
    %v675 = vunpack.c.h.b16 %v291
    %v676 = vunpack.c.l.b16 %v292
    %v677 = vunpack.c.h.b16 %v292
    %v678 = vunpack.c.l.b16 %v293
    %v679 = vunpack.c.h.b16 %v293
    %v680 = vunpack.c.l.b16 %v294
    %v681 = vunpack.c.h.b16 %v294
    %v682 = vunpack.c.l.b16 %v295
    %v683 = vunpack.c.h.b16 %v295
    %v684 = vunpack.c.l.b16 %v296
    %v685 = vunpack.c.h.b16 %v296
    %v686 = vunpack.c.l.b16 %v297
    %v687 = vunpack.c.h.b16 %v297
    %v688 = vpack.c.b16 %v434, %v432
    %v689 = vpack.c.b16 %v435, %v433
    %v690 = vpack.c.b16 %v438, %v436
    %v691 = vpack.c.b16 %v439, %v437
    %v692 = vpack.c.b16 %v442, %v440
    %v693 = vpack.c.b16 %v443, %v441
    %v694 = vpack.c.b16 %v446, %v444
    %v695 = vpack.c.b16 %v447, %v445
    %v696 = vpack.c.b16 %v450, %v448
    %v697 = vpack.c.b16 %v451, %v449
    %v698 = vpack.c.b16 %v454, %v452
    %v699 = vpack.c.b16 %v455, %v453
    %v700 = vpack.c.b16 %v458, %v456
    %v701 = vpack.c.b16 %v459, %v457
    %v702 = vpack.c.b16 %v462, %v460
    %v703 = vpack.c.b16 %v463, %v461
    %v704 = vpack.c.b16 %v466, %v464
    %v705 = vpack.c.b16 %v467, %v465
    %v706 = vpack.c.b16 %v470, %v468
    %v707 = vpack.c.b16 %v471, %v469
    %v708 = vpack.c.b16 %v474, %v472
    %v709 = vpack.c.b16 %v475, %v473
    %v710 = vpack.c.b16 %v478, %v476
    %v711 = vpack.c.b16 %v479, %v477
    %v712 = vpack.c.b16 %v482, %v480
    %v713 = vpack.c.b16 %v483, %v481
    %v714 = vpack.c.b16 %v486, %v484
    %v715 = vpack.c.b16 %v487, %v485
    %v716 = vpack.c.b16 %v490, %v488
    %v717 = vpack.c.b16 %v491, %v489
    %v718 = vpack.c.b16 %v494, %v492
    %v719 = vpack.c.b16 %v495, %v493
    %v720 = vpack.c.b16 %v498, %v496
    %v721 = vpack.c.b16 %v499, %v497
    %v722 = vpack.c.b16 %v502, %v500
    %v723 = vpack.c.b16 %v503, %v501
    %v724 = vpack.c.b16 %v506, %v504
    %v725 = vpack.c.b16 %v507, %v505
    %v726 = vpack.c.b16 %v510, %v508
    %v727 = vpack.c.b16 %v511, %v509
    %v728 = vpack.c.b16 %v514, %v512
    %v729 = vpack.c.b16 %v515, %v513
    %v730 = vpack.c.b16 %v518, %v516
    %v731 = vpack.c.b16 %v519, %v517
    %v732 = vpack.c.b16 %v522, %v520
    %v733 = vpack.c.b16 %v523, %v521
    %v734 = vpack.c.b16 %v526, %v524
    %v735 = vpack.c.b16 %v527, %v525
    %v736 = vpack.c.b16 %v530, %v528
    %v737 = vpack.c.b16 %v531, %v529
    %v738 = vpack.c.b16 %v534, %v532
    %v739 = vpack.c.b16 %v535, %v533
    %v740 = vpack.c.b16 %v538, %v536
    %v741 = vpack.c.b16 %v539, %v537
    %v742 = vpack.c.b16 %v542, %v540
    %v743 = vpack.c.b16 %v543, %v541
    %v744 = vpack.c.b16 %v546, %v544
    %v745 = vpack.c.b16 %v547, %v545
    %v746 = vpack.c.b16 %v550, %v548
    %v747 = vpack.c.b16 %v551, %v549
    %v748 = vpack.c.b16 %v554, %v552
    %v749 = vpack.c.b16 %v555, %v553
    %v750 = vpack.c.b16 %v558, %v556
    %v751 = vpack.c.b16 %v559, %v557
    %v752 = vpack.c.b16 %v562, %v560
    %v753 = vpack.c.b16 %v563, %v561
    %v754 = vpack.c.b16 %v566, %v564
    %v755 = vpack.c.b16 %v567, %v565
    %v756 = vpack.c.b16 %v570, %v568
    %v757 = vpack.c.b16 %v571, %v569
    %v758 = vpack.c.b16 %v574, %v572
    %v759 = vpack.c.b16 %v575, %v573
    %v760 = vpack.c.b16 %v578, %v576
    %v761 = vpack.c.b16 %v579, %v577
    %v762 = vpack.c.b16 %v582, %v580
    %v763 = vpack.c.b16 %v583, %v581
    %v764 = vpack.c.b16 %v586, %v584
    %v765 = vpack.c.b16 %v587, %v585
    %v766 = vpack.c.b16 %v590, %v588
    %v767 = vpack.c.b16 %v591, %v589
    %v768 = vpack.c.b16 %v594, %v592
    %v769 = vpack.c.b16 %v595, %v593
    %v770 = vpack.c.b16 %v598, %v596
    %v771 = vpack.c.b16 %v599, %v597
    %v772 = vpack.c.b16 %v602, %v600
    %v773 = vpack.c.b16 %v603, %v601
    %v774 = vpack.c.b16 %v606, %v604
    %v775 = vpack.c.b16 %v607, %v605
    %v776 = vpack.c.b16 %v610, %v608
    %v777 = vpack.c.b16 %v611, %v609
    %v778 = vpack.c.b16 %v614, %v612
    %v779 = vpack.c.b16 %v615, %v613
    %v780 = vpack.c.b16 %v618, %v616
    %v781 = vpack.c.b16 %v619, %v617
    %v782 = vpack.c.b16 %v622, %v620
    %v783 = vpack.c.b16 %v623, %v621
    %v784 = vpack.c.b16 %v626, %v624
    %v785 = vpack.c.b16 %v627, %v625
    %v786 = vpack.c.b16 %v630, %v628
    %v787 = vpack.c.b16 %v631, %v629
    %v788 = vpack.c.b16 %v634, %v632
    %v789 = vpack.c.b16 %v635, %v633
    %v790 = vpack.c.b16 %v638, %v636
    %v791 = vpack.c.b16 %v639, %v637
    %v792 = vpack.c.b16 %v642, %v640
    %v793 = vpack.c.b16 %v643, %v641
    %v794 = vpack.c.b16 %v646, %v644
    %v795 = vpack.c.b16 %v647, %v645
    %v796 = vpack.c.b16 %v650, %v648
    %v797 = vpack.c.b16 %v651, %v649
    %v798 = vpack.c.b16 %v654, %v652
    %v799 = vpack.c.b16 %v655, %v653
    %v800 = vpack.c.b16 %v658, %v656
    %v801 = vpack.c.b16 %v659, %v657
    %v802 = vpack.c.b16 %v662, %v660
    %v803 = vpack.c.b16 %v663, %v661
    %v804 = vpack.c.b16 %v666, %v664
    %v805 = vpack.c.b16 %v667, %v665
    %v806 = vpack.c.b16 %v670, %v668
    %v807 = vpack.c.b16 %v671, %v669
    %v808 = vpack.c.b16 %v674, %v672
    %v809 = vpack.c.b16 %v675, %v673
    %v810 = vpack.c.b16 %v678, %v676
    %v811 = vpack.c.b16 %v679, %v677
    %v812 = vpack.c.b16 %v682, %v680
    %v813 = vpack.c.b16 %v683, %v681
    %v814 = vpack.c.b16 %v686, %v684
    %v815 = vpack.c.b16 %v687, %v685
    %944 = vmatpush.bf16.msra.mxu0 %v702
    %945 = vmatpush.bf16.msra.mxu0 %v700
    %946 = vmatpush.bf16.msra.mxu0 %v698
    %947 = vmatpush.bf16.msra.mxu0 %v696
    %948 = vmatpush.bf16.msra.mxu0 %v694
    %949 = vmatpush.bf16.msra.mxu0 %v692
    %950 = vmatpush.bf16.msra.mxu0 %v690
    %951 = vmatpush.bf16.msra.mxu0 %v688
    %952 = vmatmul.bf16.gmra.mxu0 %v138
    %v953 = vpop.f32.mrf.mxu0
    %v954 = vadd.f32 %v300, %v953
    %v955 = vpop.f32.mrf.mxu0
    %v956 = vadd.f32 %v300, %v955
    %957 = vmatmul.bf16.gmra.mxu0 %v146
    %v958 = vpop.f32.mrf.mxu0
    %v959 = vadd.f32 %v300, %v958
    %v960 = vpop.f32.mrf.mxu0
    %v961 = vadd.f32 %v300, %v960
    %962 = vmatmul.bf16.gmra.mxu0 %v154
    %v963 = vpop.f32.mrf.mxu0
    %v964 = vadd.f32 %v300, %v963
    %v965 = vpop.f32.mrf.mxu0
    %v966 = vadd.f32 %v300, %v965
    %967 = vmatmul.bf16.gmra.mxu0 %v162
    %v968 = vpop.f32.mrf.mxu0
    %v969 = vadd.f32 %v300, %v968
    %v970 = vpop.f32.mrf.mxu0
    %v971 = vadd.f32 %v300, %v970
    %972 = vdwg.mxu0
    %973 = vmatpush.bf16.msra.mxu0 %v718
    %974 = vmatpush.bf16.msra.mxu0 %v716
    %975 = vmatpush.bf16.msra.mxu0 %v714
    %976 = vmatpush.bf16.msra.mxu0 %v712
    %977 = vmatpush.bf16.msra.mxu0 %v710
    %978 = vmatpush.bf16.msra.mxu0 %v708
    %979 = vmatpush.bf16.msra.mxu0 %v706
    %980 = vmatpush.bf16.msra.mxu0 %v704
    %981 = vmatmul.bf16.gmra.mxu0 %v139
    %v982 = vpop.f32.mrf.mxu0
    %v983 = vadd.f32 %v954, %v982
    %v984 = vpop.f32.mrf.mxu0
    %v985 = vadd.f32 %v956, %v984
    %986 = vmatmul.bf16.gmra.mxu0 %v147
    %v987 = vpop.f32.mrf.mxu0
    %v988 = vadd.f32 %v959, %v987
    %v989 = vpop.f32.mrf.mxu0
    %v990 = vadd.f32 %v961, %v989
    %991 = vmatmul.bf16.gmra.mxu0 %v155
    %v992 = vpop.f32.mrf.mxu0
    %v993 = vadd.f32 %v964, %v992
    %v994 = vpop.f32.mrf.mxu0
    %v995 = vadd.f32 %v966, %v994
    %996 = vmatmul.bf16.gmra.mxu0 %v163
    %v997 = vpop.f32.mrf.mxu0
    %v998 = vadd.f32 %v969, %v997
    %v999 = vpop.f32.mrf.mxu0
    %v1000 = vadd.f32 %v971, %v999
    %1001 = vdwg.mxu0
    %1002 = vmatpush.bf16.msra.mxu0 %v734
    %1003 = vmatpush.bf16.msra.mxu0 %v732
    %1004 = vmatpush.bf16.msra.mxu0 %v730
    %1005 = vmatpush.bf16.msra.mxu0 %v728
    %1006 = vmatpush.bf16.msra.mxu0 %v726
    %1007 = vmatpush.bf16.msra.mxu0 %v724
    %1008 = vmatpush.bf16.msra.mxu0 %v722
    %1009 = vmatpush.bf16.msra.mxu0 %v720
    %1010 = vmatmul.bf16.gmra.mxu0 %v140
    %v1011 = vpop.f32.mrf.mxu0
    %v1012 = vadd.f32 %v983, %v1011
    %v1013 = vpop.f32.mrf.mxu0
    %v1014 = vadd.f32 %v985, %v1013
    %1015 = vmatmul.bf16.gmra.mxu0 %v148
    %v1016 = vpop.f32.mrf.mxu0
    %v1017 = vadd.f32 %v988, %v1016
    %v1018 = vpop.f32.mrf.mxu0
    %v1019 = vadd.f32 %v990, %v1018
    %1020 = vmatmul.bf16.gmra.mxu0 %v156
    %v1021 = vpop.f32.mrf.mxu0
    %v1022 = vadd.f32 %v993, %v1021
    %v1023 = vpop.f32.mrf.mxu0
    %v1024 = vadd.f32 %v995, %v1023
    %1025 = vmatmul.bf16.gmra.mxu0 %v164
    %v1026 = vpop.f32.mrf.mxu0
    %v1027 = vadd.f32 %v998, %v1026
    %v1028 = vpop.f32.mrf.mxu0
    %v1029 = vadd.f32 %v1000, %v1028
    %1030 = vdwg.mxu0
    %1031 = vmatpush.bf16.msra.mxu0 %v750
    %1032 = vmatpush.bf16.msra.mxu0 %v748
    %1033 = vmatpush.bf16.msra.mxu0 %v746
    %1034 = vmatpush.bf16.msra.mxu0 %v744
    %1035 = vmatpush.bf16.msra.mxu0 %v742
    %1036 = vmatpush.bf16.msra.mxu0 %v740
    %1037 = vmatpush.bf16.msra.mxu0 %v738
    %1038 = vmatpush.bf16.msra.mxu0 %v736
    %1039 = vmatmul.bf16.gmra.mxu0 %v141
    %v1040 = vpop.f32.mrf.mxu0
    %v1041 = vadd.f32 %v1012, %v1040
    %v1042 = vpop.f32.mrf.mxu0
    %v1043 = vadd.f32 %v1014, %v1042
    %1044 = vmatmul.bf16.gmra.mxu0 %v149
    %v1045 = vpop.f32.mrf.mxu0
    %v1046 = vadd.f32 %v1017, %v1045
    %v1047 = vpop.f32.mrf.mxu0
    %v1048 = vadd.f32 %v1019, %v1047
    %1049 = vmatmul.bf16.gmra.mxu0 %v157
    %v1050 = vpop.f32.mrf.mxu0
    %v1051 = vadd.f32 %v1022, %v1050
    %v1052 = vpop.f32.mrf.mxu0
    %v1053 = vadd.f32 %v1024, %v1052
    %1054 = vmatmul.bf16.gmra.mxu0 %v165
    %v1055 = vpop.f32.mrf.mxu0
    %v1056 = vadd.f32 %v1027, %v1055
    %v1057 = vpop.f32.mrf.mxu0
    %v1058 = vadd.f32 %v1029, %v1057
    %1059 = vdwg.mxu0
    %1060 = vmatpush.bf16.msra.mxu0 %v766
    %1061 = vmatpush.bf16.msra.mxu0 %v764
    %1062 = vmatpush.bf16.msra.mxu0 %v762
    %1063 = vmatpush.bf16.msra.mxu0 %v760
    %1064 = vmatpush.bf16.msra.mxu0 %v758
    %1065 = vmatpush.bf16.msra.mxu0 %v756
    %1066 = vmatpush.bf16.msra.mxu0 %v754
    %1067 = vmatpush.bf16.msra.mxu0 %v752
    %1068 = vmatmul.bf16.gmra.mxu0 %v142
    %v1069 = vpop.f32.mrf.mxu0
    %v1070 = vadd.f32 %v1041, %v1069
    %v1071 = vpop.f32.mrf.mxu0
    %v1072 = vadd.f32 %v1043, %v1071
    %1073 = vmatmul.bf16.gmra.mxu0 %v150
    %v1074 = vpop.f32.mrf.mxu0
    %v1075 = vadd.f32 %v1046, %v1074
    %v1076 = vpop.f32.mrf.mxu0
    %v1077 = vadd.f32 %v1048, %v1076
    %1078 = vmatmul.bf16.gmra.mxu0 %v158
    %v1079 = vpop.f32.mrf.mxu0
    %v1080 = vadd.f32 %v1051, %v1079
    %v1081 = vpop.f32.mrf.mxu0
    %v1082 = vadd.f32 %v1053, %v1081
    %1083 = vmatmul.bf16.gmra.mxu0 %v166
    %v1084 = vpop.f32.mrf.mxu0
    %v1085 = vadd.f32 %v1056, %v1084
    %v1086 = vpop.f32.mrf.mxu0
    %v1087 = vadd.f32 %v1058, %v1086
    %1088 = vdwg.mxu0
    %1089 = vmatpush.bf16.msra.mxu0 %v782
    %1090 = vmatpush.bf16.msra.mxu0 %v780
    %1091 = vmatpush.bf16.msra.mxu0 %v778
    %1092 = vmatpush.bf16.msra.mxu0 %v776
    %1093 = vmatpush.bf16.msra.mxu0 %v774
    %1094 = vmatpush.bf16.msra.mxu0 %v772
    %1095 = vmatpush.bf16.msra.mxu0 %v770
    %1096 = vmatpush.bf16.msra.mxu0 %v768
    %1097 = vmatmul.bf16.gmra.mxu0 %v143
    %v1098 = vpop.f32.mrf.mxu0
    %v1099 = vadd.f32 %v1070, %v1098
    %v1100 = vpop.f32.mrf.mxu0
    %v1101 = vadd.f32 %v1072, %v1100
    %1102 = vmatmul.bf16.gmra.mxu0 %v151
    %v1103 = vpop.f32.mrf.mxu0
    %v1104 = vadd.f32 %v1075, %v1103
    %v1105 = vpop.f32.mrf.mxu0
    %v1106 = vadd.f32 %v1077, %v1105
    %1107 = vmatmul.bf16.gmra.mxu0 %v159
    %v1108 = vpop.f32.mrf.mxu0
    %v1109 = vadd.f32 %v1080, %v1108
    %v1110 = vpop.f32.mrf.mxu0
    %v1111 = vadd.f32 %v1082, %v1110
    %1112 = vmatmul.bf16.gmra.mxu0 %v167
    %v1113 = vpop.f32.mrf.mxu0
    %v1114 = vadd.f32 %v1085, %v1113
    %v1115 = vpop.f32.mrf.mxu0
    %v1116 = vadd.f32 %v1087, %v1115
    %1117 = vdwg.mxu0
    %1118 = vmatpush.bf16.msra.mxu0 %v798
    %1119 = vmatpush.bf16.msra.mxu0 %v796
    %1120 = vmatpush.bf16.msra.mxu0 %v794
    %1121 = vmatpush.bf16.msra.mxu0 %v792
    %1122 = vmatpush.bf16.msra.mxu0 %v790
    %1123 = vmatpush.bf16.msra.mxu0 %v788
    %1124 = vmatpush.bf16.msra.mxu0 %v786
    %1125 = vmatpush.bf16.msra.mxu0 %v784
    %1126 = vmatmul.bf16.gmra.mxu0 %v144
    %v1127 = vpop.f32.mrf.mxu0
    %v1128 = vadd.f32 %v1099, %v1127
    %v1129 = vpop.f32.mrf.mxu0
    %v1130 = vadd.f32 %v1101, %v1129
    %1131 = vmatmul.bf16.gmra.mxu0 %v152
    %v1132 = vpop.f32.mrf.mxu0
    %v1133 = vadd.f32 %v1104, %v1132
    %v1134 = vpop.f32.mrf.mxu0
    %v1135 = vadd.f32 %v1106, %v1134
    %1136 = vmatmul.bf16.gmra.mxu0 %v160
    %v1137 = vpop.f32.mrf.mxu0
    %v1138 = vadd.f32 %v1109, %v1137
    %v1139 = vpop.f32.mrf.mxu0
    %v1140 = vadd.f32 %v1111, %v1139
    %1141 = vmatmul.bf16.gmra.mxu0 %v168
    %v1142 = vpop.f32.mrf.mxu0
    %v1143 = vadd.f32 %v1114, %v1142
    %v1144 = vpop.f32.mrf.mxu0
    %v1145 = vadd.f32 %v1116, %v1144
    %1146 = vdwg.mxu0
    %1147 = vmatpush.bf16.msra.mxu0 %v814
    %1148 = vmatpush.bf16.msra.mxu0 %v812
    %1149 = vmatpush.bf16.msra.mxu0 %v810
    %1150 = vmatpush.bf16.msra.mxu0 %v808
    %1151 = vmatpush.bf16.msra.mxu0 %v806
    %1152 = vmatpush.bf16.msra.mxu0 %v804
    %1153 = vmatpush.bf16.msra.mxu0 %v802
    %1154 = vmatpush.bf16.msra.mxu0 %v800
    %1155 = vmatmul.bf16.gmra.mxu0 %v145
    %v1156 = vpop.f32.mrf.mxu0
    %v1157 = vadd.f32 %v1128, %v1156
    %v1158 = vpop.f32.mrf.mxu0
    %v1159 = vadd.f32 %v1130, %v1158
    %1160 = vmatmul.bf16.gmra.mxu0 %v153
    %v1161 = vpop.f32.mrf.mxu0
    %v1162 = vadd.f32 %v1133, %v1161
    %v1163 = vpop.f32.mrf.mxu0
    %v1164 = vadd.f32 %v1135, %v1163
    %1165 = vmatmul.bf16.gmra.mxu0 %v161
    %v1166 = vpop.f32.mrf.mxu0
    %v1167 = vadd.f32 %v1138, %v1166
    %v1168 = vpop.f32.mrf.mxu0
    %v1169 = vadd.f32 %v1140, %v1168
    %1170 = vmatmul.bf16.gmra.mxu0 %v169
    %v1171 = vpop.f32.mrf.mxu0
    %v1172 = vadd.f32 %v1143, %v1171
    %v1173 = vpop.f32.mrf.mxu0
    %v1174 = vadd.f32 %v1145, %v1173
    %1175 = vdwg.mxu0
    %1176 = vmatpush.bf16.msra.mxu0 %v703
    %1177 = vmatpush.bf16.msra.mxu0 %v701
    %1178 = vmatpush.bf16.msra.mxu0 %v699
    %1179 = vmatpush.bf16.msra.mxu0 %v697
    %1180 = vmatpush.bf16.msra.mxu0 %v695
    %1181 = vmatpush.bf16.msra.mxu0 %v693
    %1182 = vmatpush.bf16.msra.mxu0 %v691
    %1183 = vmatpush.bf16.msra.mxu0 %v689
    %1184 = vmatmul.bf16.gmra.mxu0 %v138
    %v1185 = vpop.f32.mrf.mxu0
    %v1186 = vadd.f32 %v301, %v1185
    %v1187 = vpop.f32.mrf.mxu0
    %v1188 = vadd.f32 %v301, %v1187
    %1189 = vmatmul.bf16.gmra.mxu0 %v146
    %v1190 = vpop.f32.mrf.mxu0
    %v1191 = vadd.f32 %v301, %v1190
    %v1192 = vpop.f32.mrf.mxu0
    %v1193 = vadd.f32 %v301, %v1192
    %1194 = vmatmul.bf16.gmra.mxu0 %v154
    %v1195 = vpop.f32.mrf.mxu0
    %v1196 = vadd.f32 %v301, %v1195
    %v1197 = vpop.f32.mrf.mxu0
    %v1198 = vadd.f32 %v301, %v1197
    %1199 = vmatmul.bf16.gmra.mxu0 %v162
    %v1200 = vpop.f32.mrf.mxu0
    %v1201 = vadd.f32 %v301, %v1200
    %v1202 = vpop.f32.mrf.mxu0
    %v1203 = vadd.f32 %v301, %v1202
    %1204 = vdwg.mxu0
    %1205 = vmatpush.bf16.msra.mxu0 %v719
    %1206 = vmatpush.bf16.msra.mxu0 %v717
    %1207 = vmatpush.bf16.msra.mxu0 %v715
    %1208 = vmatpush.bf16.msra.mxu0 %v713
    %1209 = vmatpush.bf16.msra.mxu0 %v711
    %1210 = vmatpush.bf16.msra.mxu0 %v709
    %1211 = vmatpush.bf16.msra.mxu0 %v707
    %1212 = vmatpush.bf16.msra.mxu0 %v705
    %1213 = vmatmul.bf16.gmra.mxu0 %v139
    %v1214 = vpop.f32.mrf.mxu0
    %v1215 = vadd.f32 %v1186, %v1214
    %v1216 = vpop.f32.mrf.mxu0
    %v1217 = vadd.f32 %v1188, %v1216
    %1218 = vmatmul.bf16.gmra.mxu0 %v147
    %v1219 = vpop.f32.mrf.mxu0
    %v1220 = vadd.f32 %v1191, %v1219
    %v1221 = vpop.f32.mrf.mxu0
    %v1222 = vadd.f32 %v1193, %v1221
    %1223 = vmatmul.bf16.gmra.mxu0 %v155
    %v1224 = vpop.f32.mrf.mxu0
    %v1225 = vadd.f32 %v1196, %v1224
    %v1226 = vpop.f32.mrf.mxu0
    %v1227 = vadd.f32 %v1198, %v1226
    %1228 = vmatmul.bf16.gmra.mxu0 %v163
    %v1229 = vpop.f32.mrf.mxu0
    %v1230 = vadd.f32 %v1201, %v1229
    %v1231 = vpop.f32.mrf.mxu0
    %v1232 = vadd.f32 %v1203, %v1231
    %1233 = vdwg.mxu0
    %1234 = vmatpush.bf16.msra.mxu0 %v735
    %1235 = vmatpush.bf16.msra.mxu0 %v733
    %1236 = vmatpush.bf16.msra.mxu0 %v731
    %1237 = vmatpush.bf16.msra.mxu0 %v729
    %1238 = vmatpush.bf16.msra.mxu0 %v727
    %1239 = vmatpush.bf16.msra.mxu0 %v725
    %1240 = vmatpush.bf16.msra.mxu0 %v723
    %1241 = vmatpush.bf16.msra.mxu0 %v721
    %1242 = vmatmul.bf16.gmra.mxu0 %v140
    %v1243 = vpop.f32.mrf.mxu0
    %v1244 = vadd.f32 %v1215, %v1243
    %v1245 = vpop.f32.mrf.mxu0
    %v1246 = vadd.f32 %v1217, %v1245
    %1247 = vmatmul.bf16.gmra.mxu0 %v148
    %v1248 = vpop.f32.mrf.mxu0
    %v1249 = vadd.f32 %v1220, %v1248
    %v1250 = vpop.f32.mrf.mxu0
    %v1251 = vadd.f32 %v1222, %v1250
    %1252 = vmatmul.bf16.gmra.mxu0 %v156
    %v1253 = vpop.f32.mrf.mxu0
    %v1254 = vadd.f32 %v1225, %v1253
    %v1255 = vpop.f32.mrf.mxu0
    %v1256 = vadd.f32 %v1227, %v1255
    %1257 = vmatmul.bf16.gmra.mxu0 %v164
    %v1258 = vpop.f32.mrf.mxu0
    %v1259 = vadd.f32 %v1230, %v1258
    %v1260 = vpop.f32.mrf.mxu0
    %v1261 = vadd.f32 %v1232, %v1260
    %1262 = vdwg.mxu0
    %1263 = vmatpush.bf16.msra.mxu0 %v751
    %1264 = vmatpush.bf16.msra.mxu0 %v749
    %1265 = vmatpush.bf16.msra.mxu0 %v747
    %1266 = vmatpush.bf16.msra.mxu0 %v745
    %1267 = vmatpush.bf16.msra.mxu0 %v743
    %1268 = vmatpush.bf16.msra.mxu0 %v741
    %1269 = vmatpush.bf16.msra.mxu0 %v739
    %1270 = vmatpush.bf16.msra.mxu0 %v737
    %1271 = vmatmul.bf16.gmra.mxu0 %v141
    %v1272 = vpop.f32.mrf.mxu0
    %v1273 = vadd.f32 %v1244, %v1272
    %v1274 = vpop.f32.mrf.mxu0
    %v1275 = vadd.f32 %v1246, %v1274
    %1276 = vmatmul.bf16.gmra.mxu0 %v149
    %v1277 = vpop.f32.mrf.mxu0
    %v1278 = vadd.f32 %v1249, %v1277
    %v1279 = vpop.f32.mrf.mxu0
    %v1280 = vadd.f32 %v1251, %v1279
    %1281 = vmatmul.bf16.gmra.mxu0 %v157
    %v1282 = vpop.f32.mrf.mxu0
    %v1283 = vadd.f32 %v1254, %v1282
    %v1284 = vpop.f32.mrf.mxu0
    %v1285 = vadd.f32 %v1256, %v1284
    %1286 = vmatmul.bf16.gmra.mxu0 %v165
    %v1287 = vpop.f32.mrf.mxu0
    %v1288 = vadd.f32 %v1259, %v1287
    %v1289 = vpop.f32.mrf.mxu0
    %v1290 = vadd.f32 %v1261, %v1289
    %1291 = vdwg.mxu0
    %1292 = vmatpush.bf16.msra.mxu0 %v767
    %1293 = vmatpush.bf16.msra.mxu0 %v765
    %1294 = vmatpush.bf16.msra.mxu0 %v763
    %1295 = vmatpush.bf16.msra.mxu0 %v761
    %1296 = vmatpush.bf16.msra.mxu0 %v759
    %1297 = vmatpush.bf16.msra.mxu0 %v757
    %1298 = vmatpush.bf16.msra.mxu0 %v755
    %1299 = vmatpush.bf16.msra.mxu0 %v753
    %1300 = vmatmul.bf16.gmra.mxu0 %v142
    %v1301 = vpop.f32.mrf.mxu0
    %v1302 = vadd.f32 %v1273, %v1301
    %v1303 = vpop.f32.mrf.mxu0
    %v1304 = vadd.f32 %v1275, %v1303
    %1305 = vmatmul.bf16.gmra.mxu0 %v150
    %v1306 = vpop.f32.mrf.mxu0
    %v1307 = vadd.f32 %v1278, %v1306
    %v1308 = vpop.f32.mrf.mxu0
    %v1309 = vadd.f32 %v1280, %v1308
    %1310 = vmatmul.bf16.gmra.mxu0 %v158
    %v1311 = vpop.f32.mrf.mxu0
    %v1312 = vadd.f32 %v1283, %v1311
    %v1313 = vpop.f32.mrf.mxu0
    %v1314 = vadd.f32 %v1285, %v1313
    %1315 = vmatmul.bf16.gmra.mxu0 %v166
    %v1316 = vpop.f32.mrf.mxu0
    %v1317 = vadd.f32 %v1288, %v1316
    %v1318 = vpop.f32.mrf.mxu0
    %v1319 = vadd.f32 %v1290, %v1318
    %1320 = vdwg.mxu0
    %1321 = vmatpush.bf16.msra.mxu0 %v783
    %1322 = vmatpush.bf16.msra.mxu0 %v781
    %1323 = vmatpush.bf16.msra.mxu0 %v779
    %1324 = vmatpush.bf16.msra.mxu0 %v777
    %1325 = vmatpush.bf16.msra.mxu0 %v775
    %1326 = vmatpush.bf16.msra.mxu0 %v773
    %1327 = vmatpush.bf16.msra.mxu0 %v771
    %1328 = vmatpush.bf16.msra.mxu0 %v769
    %1329 = vmatmul.bf16.gmra.mxu0 %v143
    %v1330 = vpop.f32.mrf.mxu0
    %v1331 = vadd.f32 %v1302, %v1330
    %v1332 = vpop.f32.mrf.mxu0
    %v1333 = vadd.f32 %v1304, %v1332
    %1334 = vmatmul.bf16.gmra.mxu0 %v151
    %v1335 = vpop.f32.mrf.mxu0
    %v1336 = vadd.f32 %v1307, %v1335
    %v1337 = vpop.f32.mrf.mxu0
    %v1338 = vadd.f32 %v1309, %v1337
    %1339 = vmatmul.bf16.gmra.mxu0 %v159
    %v1340 = vpop.f32.mrf.mxu0
    %v1341 = vadd.f32 %v1312, %v1340
    %v1342 = vpop.f32.mrf.mxu0
    %v1343 = vadd.f32 %v1314, %v1342
    %1344 = vmatmul.bf16.gmra.mxu0 %v167
    %v1345 = vpop.f32.mrf.mxu0
    %v1346 = vadd.f32 %v1317, %v1345
    %v1347 = vpop.f32.mrf.mxu0
    %v1348 = vadd.f32 %v1319, %v1347
    %1349 = vdwg.mxu0
    %1350 = vmatpush.bf16.msra.mxu0 %v799
    %1351 = vmatpush.bf16.msra.mxu0 %v797
    %1352 = vmatpush.bf16.msra.mxu0 %v795
    %1353 = vmatpush.bf16.msra.mxu0 %v793
    %1354 = vmatpush.bf16.msra.mxu0 %v791
    %1355 = vmatpush.bf16.msra.mxu0 %v789
    %1356 = vmatpush.bf16.msra.mxu0 %v787
    %1357 = vmatpush.bf16.msra.mxu0 %v785
    %1358 = vmatmul.bf16.gmra.mxu0 %v144
    %v1359 = vpop.f32.mrf.mxu0
    %v1360 = vadd.f32 %v1331, %v1359
    %v1361 = vpop.f32.mrf.mxu0
    %v1362 = vadd.f32 %v1333, %v1361
    %1363 = vmatmul.bf16.gmra.mxu0 %v152
    %v1364 = vpop.f32.mrf.mxu0
    %v1365 = vadd.f32 %v1336, %v1364
    %v1366 = vpop.f32.mrf.mxu0
    %v1367 = vadd.f32 %v1338, %v1366
    %1368 = vmatmul.bf16.gmra.mxu0 %v160
    %v1369 = vpop.f32.mrf.mxu0
    %v1370 = vadd.f32 %v1341, %v1369
    %v1371 = vpop.f32.mrf.mxu0
    %v1372 = vadd.f32 %v1343, %v1371
    %1373 = vmatmul.bf16.gmra.mxu0 %v168
    %v1374 = vpop.f32.mrf.mxu0
    %v1375 = vadd.f32 %v1346, %v1374
    %v1376 = vpop.f32.mrf.mxu0
    %v1377 = vadd.f32 %v1348, %v1376
    %1378 = vdwg.mxu0
    %1379 = vmatpush.bf16.msra.mxu0 %v815
    %1380 = vmatpush.bf16.msra.mxu0 %v813
    %1381 = vmatpush.bf16.msra.mxu0 %v811
    %1382 = vmatpush.bf16.msra.mxu0 %v809
    %1383 = vmatpush.bf16.msra.mxu0 %v807
    %1384 = vmatpush.bf16.msra.mxu0 %v805
    %1385 = vmatpush.bf16.msra.mxu0 %v803
    %1386 = vmatpush.bf16.msra.mxu0 %v801
    %1387 = vmatmul.bf16.gmra.mxu0 %v145
    %v1388 = vpop.f32.mrf.mxu0
    %v1389 = vadd.f32 %v1360, %v1388
    %v1390 = vpop.f32.mrf.mxu0
    %v1391 = vadd.f32 %v1362, %v1390
    %1392 = vmatmul.bf16.gmra.mxu0 %v153
    %v1393 = vpop.f32.mrf.mxu0
    %v1394 = vadd.f32 %v1365, %v1393
    %v1395 = vpop.f32.mrf.mxu0
    %v1396 = vadd.f32 %v1367, %v1395
    %1397 = vmatmul.bf16.gmra.mxu0 %v161
    %v1398 = vpop.f32.mrf.mxu0
    %v1399 = vadd.f32 %v1370, %v1398
    %v1400 = vpop.f32.mrf.mxu0
    %v1401 = vadd.f32 %v1372, %v1400
    %1402 = vmatmul.bf16.gmra.mxu0 %v169
    %v1403 = vpop.f32.mrf.mxu0
    %v1404 = vadd.f32 %v1375, %v1403
    %v1405 = vpop.f32.mrf.mxu0
    %v1406 = vadd.f32 %v1377, %v1405
    %1407 = vdwg.mxu0
    %v1408 = vmax.f32 %v1157, 0.0
    %v1409 = vmax.f32 %v1389, 0.0
    %v1410 = vmax.f32 %v1159, 0.0
    %v1411 = vmax.f32 %v1391, 0.0
    %v1412 = vmax.f32 %v1162, 0.0
    %v1413 = vmax.f32 %v1394, 0.0
    %v1414 = vmax.f32 %v1164, 0.0
    %v1415 = vmax.f32 %v1396, 0.0
    %v1416 = vmax.f32 %v1167, 0.0
    %v1417 = vmax.f32 %v1399, 0.0
    %v1418 = vmax.f32 %v1169, 0.0
    %v1419 = vmax.f32 %v1401, 0.0
    %v1420 = vmax.f32 %v1172, 0.0
    %v1421 = vmax.f32 %v1404, 0.0
    %v1422 = vmax.f32 %v1174, 0.0
    %v1423 = vmax.f32 %v1406, 0.0
    %v1424 = vpack.c.bf16 %v1410, %v1408
    %v1425 = vpack.c.bf16 %v1411, %v1409
    %v1426 = vpack.c.bf16 %v1414, %v1412
    %v1427 = vpack.c.bf16 %v1415, %v1413
    %v1428 = vpack.c.bf16 %v1418, %v1416
    %v1429 = vpack.c.bf16 %v1419, %v1417
    %v1430 = vpack.c.bf16 %v1422, %v1420
    %v1431 = vpack.c.bf16 %v1423, %v1421
    %v1432 = vld [vmem:[#allocation7] sm:$0xf]
    %v1433 = vld [vmem:[#allocation7 + $0x4] sm:$0xf]
    %v1434 = vld [vmem:[#allocation7 + $0x8] sm:$0xf]
    %v1435 = vld [vmem:[#allocation7 + $0xc] sm:$0xf]
    %v1436 = vld [vmem:[#allocation7 + $0x10] sm:$0xf]
    %v1437 = vld [vmem:[#allocation7 + $0x14] sm:$0xf]
    %v1438 = vld [vmem:[#allocation7 + $0x18] sm:$0xf]
    %v1439 = vld [vmem:[#allocation7 + $0x1c] sm:$0xf]
    %v1440 = vld [vmem:[#allocation7 + $0x20] sm:$0xf]
    %v1441 = vld [vmem:[#allocation7 + $0x24] sm:$0xf]
    %v1442 = vld [vmem:[#allocation7 + $0x28] sm:$0xf]
    %v1443 = vld [vmem:[#allocation7 + $0x2c] sm:$0xf]
    %v1444 = vld [vmem:[#allocation7 + $0x30] sm:$0xf]
    %v1445 = vld [vmem:[#allocation7 + $0x34] sm:$0xf]
    %v1446 = vld [vmem:[#allocation7 + $0x38] sm:$0xf]
    %v1447 = vld [vmem:[#allocation7 + $0x3c] sm:$0xf]
    %v1448 = vld [vmem:[#allocation7 + $0x40] sm:$0xf]
    %v1449 = vld [vmem:[#allocation7 + $0x44] sm:$0xf]
    %v1450 = vld [vmem:[#allocation7 + $0x48] sm:$0xf]
    %v1451 = vld [vmem:[#allocation7 + $0x4c] sm:$0xf]
    %v1452 = vld [vmem:[#allocation7 + $0x50] sm:$0xf]
    %v1453 = vld [vmem:[#allocation7 + $0x54] sm:$0xf]
    %v1454 = vld [vmem:[#allocation7 + $0x58] sm:$0xf]
    %v1455 = vld [vmem:[#allocation7 + $0x5c] sm:$0xf]
    %v1456 = vld [vmem:[#allocation7 + $0x60] sm:$0xf]
    %v1457 = vld [vmem:[#allocation7 + $0x64] sm:$0xf]
    %v1458 = vld [vmem:[#allocation7 + $0x68] sm:$0xf]
    %v1459 = vld [vmem:[#allocation7 + $0x6c] sm:$0xf]
    %v1460 = vld [vmem:[#allocation7 + $0x70] sm:$0xf]
    %v1461 = vld [vmem:[#allocation7 + $0x74] sm:$0xf]
    %v1462 = vld [vmem:[#allocation7 + $0x78] sm:$0xf]
    %v1463 = vld [vmem:[#allocation7 + $0x7c] sm:$0xf]
    %v1464 = vld [vmem:[%s4] sm:$0x1]
    %v1466 = vperm.slane %v1464, 0
    %v1500 = vunpack.c.l.b16 %v1432
    %v1501 = vunpack.c.l.b16 %v1433
    %v1502 = vunpack.c.l.b16 %v1434
    %v1503 = vunpack.c.l.b16 %v1435
    %v1504 = vunpack.c.l.b16 %v1436
    %v1505 = vunpack.c.l.b16 %v1437
    %v1506 = vunpack.c.l.b16 %v1438
    %v1507 = vunpack.c.l.b16 %v1439
    %v1508 = vunpack.c.l.b16 %v1440
    %v1509 = vunpack.c.l.b16 %v1441
    %v1510 = vunpack.c.l.b16 %v1442
    %v1511 = vunpack.c.l.b16 %v1443
    %v1512 = vunpack.c.l.b16 %v1444
    %v1513 = vunpack.c.l.b16 %v1445
    %v1514 = vunpack.c.l.b16 %v1446
    %v1515 = vunpack.c.l.b16 %v1447
    %v1516 = vunpack.c.l.b16 %v1448
    %v1517 = vunpack.c.l.b16 %v1449
    %v1518 = vunpack.c.l.b16 %v1450
    %v1519 = vunpack.c.l.b16 %v1451
    %v1520 = vunpack.c.l.b16 %v1452
    %v1521 = vunpack.c.l.b16 %v1453
    %v1522 = vunpack.c.l.b16 %v1454
    %v1523 = vunpack.c.l.b16 %v1455
    %v1524 = vunpack.c.l.b16 %v1456
    %v1525 = vunpack.c.l.b16 %v1457
    %v1526 = vunpack.c.l.b16 %v1458
    %v1527 = vunpack.c.l.b16 %v1459
    %v1528 = vunpack.c.l.b16 %v1460
    %v1529 = vunpack.c.l.b16 %v1461
    %v1530 = vunpack.c.l.b16 %v1462
    %v1531 = vunpack.c.l.b16 %v1463
    %v1532 = vpack.c.b16 %v1501, %v1500
    %v1533 = vpack.c.b16 %v1503, %v1502
    %v1534 = vpack.c.b16 %v1505, %v1504
    %v1535 = vpack.c.b16 %v1507, %v1506
    %v1536 = vpack.c.b16 %v1509, %v1508
    %v1537 = vpack.c.b16 %v1511, %v1510
    %v1538 = vpack.c.b16 %v1513, %v1512
    %v1539 = vpack.c.b16 %v1515, %v1514
    %v1540 = vpack.c.b16 %v1517, %v1516
    %v1541 = vpack.c.b16 %v1519, %v1518
    %v1542 = vpack.c.b16 %v1521, %v1520
    %v1543 = vpack.c.b16 %v1523, %v1522
    %v1544 = vpack.c.b16 %v1525, %v1524
    %v1545 = vpack.c.b16 %v1527, %v1526
    %v1546 = vpack.c.b16 %v1529, %v1528
    %v1547 = vpack.c.b16 %v1531, %v1530
    %1564 = vmatpush.bf16.msra.mxu0 %v1539
    %1565 = vmatpush.bf16.msra.mxu0 %v1538
    %1566 = vmatpush.bf16.msra.mxu0 %v1537
    %1567 = vmatpush.bf16.msra.mxu0 %v1536
    %1568 = vmatpush.bf16.msra.mxu0 %v1535
    %1569 = vmatpush.bf16.msra.mxu0 %v1534
    %1570 = vmatpush.bf16.msra.mxu0 %v1533
    %1571 = vmatpush.bf16.msra.mxu0 %v1532
    %1572 = vmatmul.bf16.gmra.mxu0 %v1424
    %v1573 = vpop.f32.mrf.mxu0
    %v1574 = vadd.f32 %v1466, %v1573
    %v1575 = vpop.f32.mrf.mxu0
    %v1576 = vadd.f32 %v1466, %v1575
    %1577 = vmatmul.bf16.gmra.mxu0 %v1426
    %v1578 = vpop.f32.mrf.mxu0
    %v1579 = vadd.f32 %v1466, %v1578
    %v1580 = vpop.f32.mrf.mxu0
    %v1581 = vadd.f32 %v1466, %v1580
    %1582 = vmatmul.bf16.gmra.mxu0 %v1428
    %v1583 = vpop.f32.mrf.mxu0
    %v1584 = vadd.f32 %v1466, %v1583
    %v1585 = vpop.f32.mrf.mxu0
    %v1586 = vadd.f32 %v1466, %v1585
    %1587 = vmatmul.bf16.gmra.mxu0 %v1430
    %v1588 = vpop.f32.mrf.mxu0
    %v1589 = vadd.f32 %v1466, %v1588
    %v1590 = vpop.f32.mrf.mxu0
    %v1591 = vadd.f32 %v1466, %v1590
    %1592 = vdwg.mxu0
    %1593 = vmatpush.bf16.msra.mxu0 %v1547
    %1594 = vmatpush.bf16.msra.mxu0 %v1546
    %1595 = vmatpush.bf16.msra.mxu0 %v1545
    %1596 = vmatpush.bf16.msra.mxu0 %v1544
    %1597 = vmatpush.bf16.msra.mxu0 %v1543
    %1598 = vmatpush.bf16.msra.mxu0 %v1542
    %1599 = vmatpush.bf16.msra.mxu0 %v1541
    %1600 = vmatpush.bf16.msra.mxu0 %v1540
    %1601 = vmatmul.bf16.gmra.mxu0 %v1425
    %v1602 = vpop.f32.mrf.mxu0
    %v1603 = vadd.f32 %v1574, %v1602
    %v1604 = vpop.f32.mrf.mxu0
    %v1605 = vadd.f32 %v1576, %v1604
    %1606 = vmatmul.bf16.gmra.mxu0 %v1427
    %v1607 = vpop.f32.mrf.mxu0
    %v1608 = vadd.f32 %v1579, %v1607
    %v1609 = vpop.f32.mrf.mxu0
    %v1610 = vadd.f32 %v1581, %v1609
    %1611 = vmatmul.bf16.gmra.mxu0 %v1429
    %v1612 = vpop.f32.mrf.mxu0
    %v1613 = vadd.f32 %v1584, %v1612
    %v1614 = vpop.f32.mrf.mxu0
    %v1615 = vadd.f32 %v1586, %v1614
    %1616 = vmatmul.bf16.gmra.mxu0 %v1431
    %v1617 = vpop.f32.mrf.mxu0
    %v1618 = vadd.f32 %v1589, %v1617
    %v1619 = vpop.f32.mrf.mxu0
    %v1620 = vadd.f32 %v1591, %v1619
    %1621 = vdwg.mxu0
    %v1622 = vmax.f32 %v1603, 0.0
    %v1623 = vmax.f32 %v1605, 0.0
    %v1624 = vmax.f32 %v1608, 0.0
    %v1625 = vmax.f32 %v1610, 0.0
    %v1626 = vmax.f32 %v1613, 0.0
    %v1627 = vmax.f32 %v1615, 0.0
    %v1628 = vmax.f32 %v1618, 0.0
    %v1629 = vmax.f32 %v1620, 0.0
    %v1630 = vpack.c.bf16 %v1623, %v1622
    %v1631 = vpack.c.bf16 %v1625, %v1624
    %v1632 = vpack.c.bf16 %v1627, %v1626
    %v1633 = vpack.c.bf16 %v1629, %v1628
    %v1634 = vld [vmem:[%s5] sm:$0xf]
    %v1635 = vld [vmem:[%s5 + $0x4] sm:$0xf]
    %v1636 = vld [vmem:[%s5 + $0x8] sm:$0xf]
    %v1637 = vld [vmem:[%s5 + $0xc] sm:$0xf]
    %v1638 = vld [vmem:[%s5 + $0x10] sm:$0xf]
    %v1639 = vld [vmem:[%s5 + $0x14] sm:$0xf]
    %v1640 = vld [vmem:[%s5 + $0x18] sm:$0xf]
    %v1641 = vld [vmem:[%s5 + $0x1c] sm:$0xf]
    %v1642 = vld [vmem:[%s5 + $0x20] sm:$0xf]
    %v1643 = vld [vmem:[%s5 + $0x24] sm:$0xf]
    %v1644 = vld [vmem:[%s5 + $0x28] sm:$0xf]
    %v1645 = vld [vmem:[%s5 + $0x2c] sm:$0xf]
    %v1646 = vld [vmem:[%s5 + $0x30] sm:$0xf]
    %v1647 = vld [vmem:[%s5 + $0x34] sm:$0xf]
    %v1648 = vld [vmem:[%s5 + $0x38] sm:$0xf]
    %v1649 = vld [vmem:[%s5 + $0x3c] sm:$0xf]
    %v1650 = vld [vmem:[%s6] sm:$0x1]
    %v1652 = vperm.slane %v1650, 0
    %v1670 = vunpack.c.l.b16 %v1634
    %v1671 = vunpack.c.l.b16 %v1635
    %v1672 = vunpack.c.l.b16 %v1636
    %v1673 = vunpack.c.l.b16 %v1637
    %v1674 = vunpack.c.l.b16 %v1638
    %v1675 = vunpack.c.l.b16 %v1639
    %v1676 = vunpack.c.l.b16 %v1640
    %v1677 = vunpack.c.l.b16 %v1641
    %v1678 = vunpack.c.l.b16 %v1642
    %v1679 = vunpack.c.l.b16 %v1643
    %v1680 = vunpack.c.l.b16 %v1644
    %v1681 = vunpack.c.l.b16 %v1645
    %v1682 = vunpack.c.l.b16 %v1646
    %v1683 = vunpack.c.l.b16 %v1647
    %v1684 = vunpack.c.l.b16 %v1648
    %v1685 = vunpack.c.l.b16 %v1649
    %v1686 = vpack.c.b16 %v1671, %v1670
    %v1687 = vpack.c.b16 %v1673, %v1672
    %v1688 = vpack.c.b16 %v1675, %v1674
    %v1689 = vpack.c.b16 %v1677, %v1676
    %v1690 = vpack.c.b16 %v1679, %v1678
    %v1691 = vpack.c.b16 %v1681, %v1680
    %v1692 = vpack.c.b16 %v1683, %v1682
    %v1693 = vpack.c.b16 %v1685, %v1684
    %1702 = vmatpush.bf16.msra.mxu0 %v1693
    %1703 = vmatpush.bf16.msra.mxu0 %v1692
    %1704 = vmatpush.bf16.msra.mxu0 %v1691
    %1705 = vmatpush.bf16.msra.mxu0 %v1690
    %1706 = vmatpush.bf16.msra.mxu0 %v1689
    %1707 = vmatpush.bf16.msra.mxu0 %v1688
    %1708 = vmatpush.bf16.msra.mxu0 %v1687
    %1709 = vmatpush.bf16.msra.mxu0 %v1686
    %1710 = vmatmul.bf16.gmra.mxu0 %v1630
    %v1711 = vpop.f32.mrf.mxu0
    %v1712 = vadd.f32 %v1652, %v1711
    %v1713 = vpop.f32.mrf.mxu0
    %v1714 = vadd.f32 %v1652, %v1713
    %1715 = vmatmul.bf16.gmra.mxu0 %v1631
    %v1716 = vpop.f32.mrf.mxu0
    %v1717 = vadd.f32 %v1652, %v1716
    %v1718 = vpop.f32.mrf.mxu0
    %v1719 = vadd.f32 %v1652, %v1718
    %1720 = vmatmul.bf16.gmra.mxu0 %v1632
    %v1721 = vpop.f32.mrf.mxu0
    %v1722 = vadd.f32 %v1652, %v1721
    %v1723 = vpop.f32.mrf.mxu0
    %v1724 = vadd.f32 %v1652, %v1723
    %1725 = vmatmul.bf16.gmra.mxu0 %v1633
    %v1726 = vpop.f32.mrf.mxu0
    %v1727 = vadd.f32 %v1652, %v1726
    %v1728 = vpop.f32.mrf.mxu0
    %v1729 = vadd.f32 %v1652, %v1728
    %1730 = vdwg.mxu0
    %vm1731 = vcmask 523264
    %1732 = vst.msk [vmem:[#allocation8] sm:$0xff] %vm1731, %v1712
    %1733 = vst.msk [vmem:[#allocation8 + $0x8] sm:$0xff] %vm1731, %v1714
    %1734 = vst.msk [vmem:[#allocation8 + $0x10] sm:$0xff] %vm1731, %v1717
    %1735 = vst.msk [vmem:[#allocation8 + $0x18] sm:$0xff] %vm1731, %v1719
    %1736 = vst.msk [vmem:[#allocation8 + $0x20] sm:$0xff] %vm1731, %v1722
    %1737 = vst.msk [vmem:[#allocation8 + $0x28] sm:$0xff] %vm1731, %v1724
    %1738 = vst.msk [vmem:[#allocation8 + $0x30] sm:$0xff] %vm1731, %v1727
    %1739 = vst.msk [vmem:[#allocation8 + $0x38] sm:$0xff] %vm1731, %v1729
    // Predicated region
    $region42: #{downstream_task_forward.1} parent=1 // pred_check
      _
    $region43: #{downstream_task_forward.1} parent=1 // pred_check_branch
      %1741 = sbr.rel (0) target = $region45
    $region44: #{downstream_task_forward.1} parent=1 // pred_region
      %1743 = vsyncadd [#allocation4], 0
      %s1744 = sshll.u32 [#allocation8], 4
      %s1745 = int_to_ptr.vmem [resolvable:$true] %s1744
      %s1746 = sshll.u32 %s7, 4
      %s1747 = int_to_ptr.hbm [resolvable:$true] %s1746
      %1752 = dma.vmem_to_hbm [thread:$0]  %s1745, 1024, %s1747, [#allocation4], 128, 128, 8
    $region45: #{downstream_task_forward.1} parent=1 // pred_fallthru
      _
    // Predicated region
    $region46: #{downstream_task_forward.1} parent=1 // pred_check
      _
    $region47: #{downstream_task_forward.1} parent=1 // pred_check_branch
      %1754 = sbr.rel (0) target = $region49
    $region48: #{downstream_task_forward.1} parent=1 // pred_region
      %1756 = dma.done [#allocation4], 1024
    $region49: #{downstream_task_forward.1} parent=1 // pred_fallthru
      _
    %1757 = vsyncpa [#allocation3], 1
    %1758 = vsyncpa [#allocation6], 1
    %1759 = vsyncpa [#allocation4], 1

</llo_original>
